<compile_context>
chip_gen: v6e
topology: v6e:2x2x1
jax: 0.10.0
libtpu: 0.0.40
codegen_flags: <defaults>
</compile_context>

<pallas_src>
import functools

import jax
import jax.numpy as jnp
from jax.experimental import pallas as pl
from jax.experimental.pallas import tpu as pltpu


# ----------------------------- in-kernel helpers -----------------------------

def _erf(x):
    # Abramowitz & Stegun 7.1.26 polynomial (max abs err ~1.5e-7); exp goes to
    # the EUP slot, the short poly chain stays on the VPU.
    a1, a2, a3, a4, a5 = 0.254829592, -0.284496736, 1.421413741, -1.453152027, 1.061405429
    p = 0.3275911
    sgn = jnp.where(x >= 0.0, 1.0, -1.0)
    ax = jnp.abs(x)
    # Plain divide kept for exactness/portability; on HW this could become
    # pl.reciprocal(1.0 + p*ax, approx=True) + one Newton step to free VALU.
    t = 1.0 / (1.0 + p * ax)
    poly = ((((a5 * t + a4) * t + a3) * t + a2) * t + a1) * t
    return sgn * (1.0 - poly * jnp.exp(-ax * ax))


def _gelu(x):  # exact (erf-based) GELU, matching torch.nn.GELU() default
    return 0.5 * x * (1.0 + _erf(x * 0.7071067811865476))


# --------------------------------- kernel ------------------------------------

def safm_kernel(x_ref, bsel_ref, vmask_ref, wt_ref, wa_ref, b2_ref, o_ref, *,
                H, W, n_levels, Cd, Nb):
    P = H * W
    wa = wa_ref[...]                      # (C, C) aggregation weight
    b2 = b2_ref[...]                      # (C, 1) folded bias (wa@bm + ba)

    # Butterfly partner-select masks depend only on the round index k -> hoist
    # the (1, P) compares once per kernel invocation.
    sels = [bsel_ref[i] > 0.5 for i in range(2 * (n_levels - 1))]

    for b in range(Nb):                   # static unroll over images in block
        x = x_ref[0, b].astype(jnp.float32)          # (C, P) lane-dense slab
        acc_parts = []
        for lvl in range(n_levels):
            f = 1 << lvl
            s = x[lvl * Cd:(lvl + 1) * Cd, :]        # (Cd, P) this level only

            # ---- 1) adaptive max pool (2^l) broadcast to full res ----------
            # Aligned-block butterfly: round k maxes with the partner at
            # (index XOR 2^k) along w then h; partners never cross row /
            # image boundaries so plain lane rolls (with wraparound) are safe.
            for k in range(lvl):
                step = 1 << k
                fwd = pltpu.roll(s, (-step) % P, axis=1)
                bwd = pltpu.roll(s, step, axis=1)
                s = jnp.maximum(s, jnp.where(sels[2 * k], fwd, bwd))
                fwd = pltpu.roll(s, (-step * W) % P, axis=1)
                bwd = pltpu.roll(s, step * W, axis=1)
                s = jnp.maximum(s, jnp.where(sels[2 * k + 1], fwd, bwd))

            # ---- 2) depthwise 3x3 (pad=1 on pooled grid) + nearest upsample -
            # == depthwise 3x3 with dilation 2^l / padding 2^l applied to the
            # block-constant map: 9 lane rolls + precomputed edge masks.
            acc = wt_ref[lvl * 9 + 4] * s            # center tap: always valid
            for ky in range(3):
                for kx in range(3):
                    dy, dx = ky - 1, kx - 1
                    if dy == 0 and dx == 0:
                        continue
                    tap = lvl * 9 + ky * 3 + kx
                    shift = (dy * W + dx) * f
                    rolled = pltpu.roll(s, (-shift) % P, axis=1)
                    acc = acc + wt_ref[tap] * (vmask_ref[tap] * rolled)
            acc_parts.append(acc)

        conv = jnp.concatenate(acc_parts, axis=0)    # (C, P)

        # ---- 3) 1x1 aggregation conv: single MXU matmul (bias pre-folded) ---
        y = jnp.dot(wa, conv, preferred_element_type=jnp.float32) + b2

        # ---- 4) GELU(y) * x  (lane-dense elementwise, lane-dense store) -----
        o_ref[0, b] = (_gelu(y) * x).astype(o_ref.dtype)


# ------------------------------ host-side prep --------------------------------
# Parameter layouts (relative to torch):
#   mfr_w[l] : (Cd, 1, 3, 3)  depthwise weight of level l   (Cd = C // n_levels)
#   mfr_b[l] : (Cd,)
#   aggr_w   : (C, C, 1, 1)   1x1 conv weight (Cout, Cin)
#   aggr_b   : (C,)

def _prep_inputs(params, C, H, W, n_levels):
    Cd = C // n_levels
    P = H * W

    # per-(level, tap) depthwise weight columns: (n_levels*9, Cd, 1)
    wt = jnp.concatenate(
        [params["mfr_w"][l].reshape(Cd, 9).T.reshape(9, Cd, 1)
         for l in range(n_levels)], axis=0).astype(jnp.float32)

    wa = params["aggr_w"].reshape(C, C).astype(jnp.float32)
    bm = jnp.concatenate([params["mfr_b"][l] for l in range(n_levels)]
                         ).astype(jnp.float32)
    ba = params["aggr_b"].astype(jnp.float32)
    b2 = (wa @ bm + ba).reshape(C, 1)      # depthwise bias folded into aggr bias

    pix = jnp.arange(P, dtype=jnp.int32)
    hh, ww = pix // W, pix % W

    # butterfly partner-select masks: 1.0 where bit_k of the (w / h) index is 0
    sels = []
    for k in range(max(n_levels - 1, 0)):
        step = 1 << k
        sels.append(((ww & step) == 0).astype(jnp.float32))
        sels.append(((hh & step) == 0).astype(jnp.float32))
    if not sels:                           # degenerate n_levels == 1
        sels = [jnp.zeros((P,), jnp.float32)]
    bsel = jnp.stack(sels, axis=0).reshape(len(sels), 1, P)

    # per-(level, tap) edge-validity masks for the dilated 3x3
    masks = []
    for l in range(n_levels):
        f = 1 << l
        for ky in range(3):
            for kx in range(3):
                dy, dx = ky - 1, kx - 1
                v = ((hh + dy * f >= 0) & (hh + dy * f < H) &
                     (ww + dx * f >= 0) & (ww + dx * f < W))
                masks.append(v.astype(jnp.float32))
    vmask = jnp.stack(masks, axis=0).reshape(n_levels * 9, 1, P)

    return bsel, vmask, wt, wa, b2


def safm_forward(x_nchw, params, n_levels=4, images_per_block=1):
    N, C, H, W = x_nchw.shape
    assert C % n_levels == 0
    Cd = C // n_levels
    fmax = 1 << (n_levels - 1)
    assert H % fmax == 0 and W % fmax == 0, "H, W must be divisible by 2**(n_levels-1)"
    Nb = images_per_block
    assert N % Nb == 0
    G = N // Nb
    P = H * W

    # lane-dense working layout: (N, C, H, W) -> (G, Nb, C, H*W); PURE reshape,
    # no HBM transpose regardless of images_per_block.
    xk = x_nchw.reshape(G, Nb, C, P)

    bsel, vmask, wt, wa, b2 = _prep_inputs(params, C, H, W, n_levels)
    nb_sel = bsel.shape[0]

    kernel = functools.partial(safm_kernel, H=H, W=W, n_levels=n_levels,
                               Cd=Cd, Nb=Nb)

    out = pl.pallas_call(
        kernel,
        out_shape=jax.ShapeDtypeStruct((G, Nb, C, P), x_nchw.dtype),
        grid_spec=pltpu.PrefetchScalarGridSpec(
            num_scalar_prefetch=0,
            grid=(G,),
            in_specs=[
                pl.BlockSpec((1, Nb, C, P), lambda n: (n, 0, 0, 0)),       # x
                pl.BlockSpec((nb_sel, 1, P), lambda n: (0, 0, 0)),         # butterfly sel
                pl.BlockSpec((n_levels * 9, 1, P), lambda n: (0, 0, 0)),   # edge masks
                pl.BlockSpec((n_levels * 9, Cd, 1), lambda n: (0, 0, 0)),  # dw tap weights
                pl.BlockSpec((C, C), lambda n: (0, 0)),                    # aggr weight
                pl.BlockSpec((C, 1), lambda n: (0, 0)),                    # folded bias
            ],
            out_specs=pl.BlockSpec((1, Nb, C, P), lambda n: (n, 0, 0, 0)),
        ),
        compiler_params=pltpu.CompilerParams(
            dimension_semantics=("parallel",)),
    )(xk, bsel, vmask, wt, wa, b2)

    return out.reshape(N, C, H, W)


# --------------------------- deterministic params -----------------------------

def init_params(key, C, n_levels=4):
    Cd = C // n_levels
    ks = jax.random.split(key, 2 * n_levels + 2)
    sc = 0.3
    mfr_w = [sc * jax.random.normal(ks[2 * l], (Cd, 1, 3, 3), jnp.float32)
             for l in range(n_levels)]
    mfr_b = [sc * jax.random.normal(ks[2 * l + 1], (Cd,), jnp.float32)
             for l in range(n_levels)]
    aggr_w = sc * jax.random.normal(ks[-2], (C, C, 1, 1), jnp.float32)
    aggr_b = sc * jax.random.normal(ks[-1], (C,), jnp.float32)
    return {"mfr_w": mfr_w, "mfr_b": mfr_b, "aggr_w": aggr_w, "aggr_b": aggr_b}


# ------------------------------ pure-JAX reference ----------------------------

def _ref_forward(x, params, n_levels=4):
    N, C, H, W = x.shape
    Cd = C // n_levels

    def dwconv(z, w, b):
        y = jax.lax.conv_general_dilated(
            z, w, (1, 1), ((1, 1), (1, 1)),
            dimension_numbers=("NCHW", "OIHW", "NCHW"),
            feature_group_count=z.shape[1])
        return y + b[None, :, None, None]

    outs = []
    for l in range(n_levels):
        xi = x[:, l * Cd:(l + 1) * Cd]
        if l == 0:
            s = dwconv(xi, params["mfr_w"][0], params["mfr_b"][0])
        else:
            f = 2 ** l
            pooled = jax.lax.reduce_window(
                xi, -jnp.inf, jax.lax.max, (1, 1, f, f), (1, 1, f, f), "VALID")
            s = dwconv(pooled, params["mfr_w"][l], params["mfr_b"][l])
            s = jnp.repeat(jnp.repeat(s, f, axis=2), f, axis=3)   # nearest upsample
        outs.append(s)
    cat = jnp.concatenate(outs, axis=1)
    y = jnp.einsum("oc,nchw->nohw", params["aggr_w"][:, :, 0, 0], cat)
    y = y + params["aggr_b"][None, :, None, None]
    return jax.nn.gelu(y, approximate=False) * x


# ----------------------------------- main -------------------------------------

if __name__ == "__main__":
    N, C, H, W = 2, 8, 16, 16        # C divisible by n_levels=4; H,W divisible by 8
    key = jax.random.PRNGKey(0)
    kx, kp = jax.random.split(key)
    x = jax.random.normal(kx, (N, C, H, W), jnp.float32)
    params = init_params(kp, C)

    out = jax.block_until_ready(safm_forward(x, params))
    ref = jax.block_until_ready(_ref_forward(x, params))

    assert out.shape == (N, C, H, W)
    err = float(jnp.max(jnp.abs(out - ref)))
    assert jnp.allclose(out, ref, atol=2e-4, rtol=2e-4), err
    print("KERNEL_OK")
</pallas_src>

<mosaic_0001>
module attributes {stable_mosaic.version = 11 : i64} {
  func.func @safm_kernel(%arg0: i32, %arg1: memref<1x1x8x256xf32, #tpu.memory_space<vmem>>, %arg2: memref<6x1x256xf32, #tpu.memory_space<vmem>>, %arg3: memref<36x1x256xf32, #tpu.memory_space<vmem>>, %arg4: memref<36x2x1xf32, #tpu.memory_space<vmem>>, %arg5: memref<8x8xf32, #tpu.memory_space<vmem>>, %arg6: memref<8x1xf32, #tpu.memory_space<vmem>>, %arg7: memref<1x1x8x256xf32, #tpu.memory_space<vmem>>) attributes {dimension_semantics = [#tpu.dimension_semantics<parallel>], iteration_bounds = array<i64: 2>, scalar_prefetch = 0 : i64, scratch_operands = 0 : i64, tpu.core_type = #tpu.core_type<tc>, window_params = [{transform_indices = @transform_0, window_bounds = array<i64: 1, 1, 8, 256>}, {pipeline_mode = #tpu.pipeline_mode<synchronous>, transform_indices = @transform_1, window_bounds = array<i64: 6, 1, 256>}, {pipeline_mode = #tpu.pipeline_mode<synchronous>, transform_indices = @transform_2, window_bounds = array<i64: 36, 1, 256>}, {pipeline_mode = #tpu.pipeline_mode<synchronous>, transform_indices = @transform_3, window_bounds = array<i64: 36, 2, 1>}, {pipeline_mode = #tpu.pipeline_mode<synchronous>, transform_indices = @transform_4, window_bounds = array<i64: 8, 8>}, {pipeline_mode = #tpu.pipeline_mode<synchronous>, transform_indices = @transform_5, window_bounds = array<i64: 8, 1>}, {transform_indices = @transform_6, window_bounds = array<i64: 1, 1, 8, 256>}]} {
    %c0 = arith.constant 0 : index
    %c0_0 = arith.constant 0 : index
    %0 = vector.load %arg5[%c0, %c0_0] : memref<8x8xf32, #tpu.memory_space<vmem>>, vector<8x8xf32>
    %c0_1 = arith.constant 0 : index
    %c0_2 = arith.constant 0 : index
    %1 = vector.load %arg6[%c0_1, %c0_2] : memref<8x1xf32, #tpu.memory_space<vmem>>, vector<8x1xf32>
    %c0_3 = arith.constant 0 : index
    %c0_4 = arith.constant 0 : index
    %c0_5 = arith.constant 0 : index
    %2 = vector.load %arg2[%c0_3, %c0_4, %c0_5] : memref<6x1x256xf32, #tpu.memory_space<vmem>>, vector<1x1x256xf32>
    %3 = vector.shape_cast %2 : vector<1x1x256xf32> to vector<1x256xf32>
    %cst = arith.constant 5.000000e-01 : f32
    %4 = vector.broadcast %cst : f32 to vector<1x256xf32>
    %5 = arith.cmpf ogt, %3, %4 : vector<1x256xf32>
    %c1 = arith.constant 1 : index
    %c0_6 = arith.constant 0 : index
    %c0_7 = arith.constant 0 : index
    %6 = vector.load %arg2[%c1, %c0_6, %c0_7] : memref<6x1x256xf32, #tpu.memory_space<vmem>>, vector<1x1x256xf32>
    %7 = vector.shape_cast %6 : vector<1x1x256xf32> to vector<1x256xf32>
    %cst_8 = arith.constant 5.000000e-01 : f32
    %8 = vector.broadcast %cst_8 : f32 to vector<1x256xf32>
    %9 = arith.cmpf ogt, %7, %8 : vector<1x256xf32>
    %c2 = arith.constant 2 : index
    %c0_9 = arith.constant 0 : index
    %c0_10 = arith.constant 0 : index
    %10 = vector.load %arg2[%c2, %c0_9, %c0_10] : memref<6x1x256xf32, #tpu.memory_space<vmem>>, vector<1x1x256xf32>
    %11 = vector.shape_cast %10 : vector<1x1x256xf32> to vector<1x256xf32>
    %cst_11 = arith.constant 5.000000e-01 : f32
    %12 = vector.broadcast %cst_11 : f32 to vector<1x256xf32>
    %13 = arith.cmpf ogt, %11, %12 : vector<1x256xf32>
    %c3 = arith.constant 3 : index
    %c0_12 = arith.constant 0 : index
    %c0_13 = arith.constant 0 : index
    %14 = vector.load %arg2[%c3, %c0_12, %c0_13] : memref<6x1x256xf32, #tpu.memory_space<vmem>>, vector<1x1x256xf32>
    %15 = vector.shape_cast %14 : vector<1x1x256xf32> to vector<1x256xf32>
    %cst_14 = arith.constant 5.000000e-01 : f32
    %16 = vector.broadcast %cst_14 : f32 to vector<1x256xf32>
    %17 = arith.cmpf ogt, %15, %16 : vector<1x256xf32>
    %c4 = arith.constant 4 : index
    %c0_15 = arith.constant 0 : index
    %c0_16 = arith.constant 0 : index
    %18 = vector.load %arg2[%c4, %c0_15, %c0_16] : memref<6x1x256xf32, #tpu.memory_space<vmem>>, vector<1x1x256xf32>
    %19 = vector.shape_cast %18 : vector<1x1x256xf32> to vector<1x256xf32>
    %cst_17 = arith.constant 5.000000e-01 : f32
    %20 = vector.broadcast %cst_17 : f32 to vector<1x256xf32>
    %21 = arith.cmpf ogt, %19, %20 : vector<1x256xf32>
    %c5 = arith.constant 5 : index
    %c0_18 = arith.constant 0 : index
    %c0_19 = arith.constant 0 : index
    %22 = vector.load %arg2[%c5, %c0_18, %c0_19] : memref<6x1x256xf32, #tpu.memory_space<vmem>>, vector<1x1x256xf32>
    %23 = vector.shape_cast %22 : vector<1x1x256xf32> to vector<1x256xf32>
    %cst_20 = arith.constant 5.000000e-01 : f32
    %24 = vector.broadcast %cst_20 : f32 to vector<1x256xf32>
    %25 = arith.cmpf ogt, %23, %24 : vector<1x256xf32>
    %c0_21 = arith.constant 0 : index
    %c0_22 = arith.constant 0 : index
    %c0_23 = arith.constant 0 : index
    %c0_24 = arith.constant 0 : index
    %26 = vector.load %arg1[%c0_21, %c0_22, %c0_23, %c0_24] : memref<1x1x8x256xf32, #tpu.memory_space<vmem>>, vector<1x1x8x256xf32>
    %27 = vector.shape_cast %26 : vector<1x1x8x256xf32> to vector<8x256xf32>
    %28 = vector.extract_strided_slice %27 {offsets = [0, 0], sizes = [2, 256], strides = [1, 1]} : vector<8x256xf32> to vector<2x256xf32>
    %c4_25 = arith.constant 4 : index
    %c0_26 = arith.constant 0 : index
    %c0_27 = arith.constant 0 : index
    %29 = vector.load %arg4[%c4_25, %c0_26, %c0_27] : memref<36x2x1xf32, #tpu.memory_space<vmem>>, vector<1x2x1xf32>
    %30 = vector.shape_cast %29 : vector<1x2x1xf32> to vector<2x1xf32>
    %31 = vector.broadcast %30 : vector<2x1xf32> to vector<2x256xf32>
    %32 = arith.mulf %31, %28 : vector<2x256xf32>
    %c17_i32 = arith.constant 17 : i32
    %33 = tpu.dynamic_rotate %28 by %c17_i32 dim 1 : vector<2x256xf32>, i32 -> vector<2x256xf32>
    %c0_28 = arith.constant 0 : index
    %c0_29 = arith.constant 0 : index
    %c0_30 = arith.constant 0 : index
    %34 = vector.load %arg4[%c0_28, %c0_29, %c0_30] : memref<36x2x1xf32, #tpu.memory_space<vmem>>, vector<1x2x1xf32>
    %35 = vector.shape_cast %34 : vector<1x2x1xf32> to vector<2x1xf32>
    %c0_31 = arith.constant 0 : index
    %c0_32 = arith.constant 0 : index
    %c0_33 = arith.constant 0 : index
    %36 = vector.load %arg3[%c0_31, %c0_32, %c0_33] : memref<36x1x256xf32, #tpu.memory_space<vmem>>, vector<1x1x256xf32>
    %37 = vector.shape_cast %36 : vector<1x1x256xf32> to vector<1x256xf32>
    %38 = vector.broadcast %37 : vector<1x256xf32> to vector<2x256xf32>
    %39 = arith.mulf %38, %33 : vector<2x256xf32>
    %40 = vector.broadcast %35 : vector<2x1xf32> to vector<2x256xf32>
    %41 = arith.mulf %40, %39 : vector<2x256xf32>
    %42 = arith.addf %32, %41 : vector<2x256xf32>
    %c16_i32 = arith.constant 16 : i32
    %43 = tpu.dynamic_rotate %28 by %c16_i32 dim 1 : vector<2x256xf32>, i32 -> vector<2x256xf32>
    %c1_34 = arith.constant 1 : index
    %c0_35 = arith.constant 0 : index
    %c0_36 = arith.constant 0 : index
    %44 = vector.load %arg4[%c1_34, %c0_35, %c0_36] : memref<36x2x1xf32, #tpu.memory_space<vmem>>, vector<1x2x1xf32>
    %45 = vector.shape_cast %44 : vector<1x2x1xf32> to vector<2x1xf32>
    %c1_37 = arith.constant 1 : index
    %c0_38 = arith.constant 0 : index
    %c0_39 = arith.constant 0 : index
    %46 = vector.load %arg3[%c1_37, %c0_38, %c0_39] : memref<36x1x256xf32, #tpu.memory_space<vmem>>, vector<1x1x256xf32>
    %47 = vector.shape_cast %46 : vector<1x1x256xf32> to vector<1x256xf32>
    %48 = vector.broadcast %47 : vector<1x256xf32> to vector<2x256xf32>
    %49 = arith.mulf %48, %43 : vector<2x256xf32>
    %50 = vector.broadcast %45 : vector<2x1xf32> to vector<2x256xf32>
    %51 = arith.mulf %50, %49 : vector<2x256xf32>
    %52 = arith.addf %42, %51 : vector<2x256xf32>
    %c15_i32 = arith.constant 15 : i32
    %53 = tpu.dynamic_rotate %28 by %c15_i32 dim 1 : vector<2x256xf32>, i32 -> vector<2x256xf32>
    %c2_40 = arith.constant 2 : index
    %c0_41 = arith.constant 0 : index
    %c0_42 = arith.constant 0 : index
    %54 = vector.load %arg4[%c2_40, %c0_41, %c0_42] : memref<36x2x1xf32, #tpu.memory_space<vmem>>, vector<1x2x1xf32>
    %55 = vector.shape_cast %54 : vector<1x2x1xf32> to vector<2x1xf32>
    %c2_43 = arith.constant 2 : index
    %c0_44 = arith.constant 0 : index
    %c0_45 = arith.constant 0 : index
    %56 = vector.load %arg3[%c2_43, %c0_44, %c0_45] : memref<36x1x256xf32, #tpu.memory_space<vmem>>, vector<1x1x256xf32>
    %57 = vector.shape_cast %56 : vector<1x1x256xf32> to vector<1x256xf32>
    %58 = vector.broadcast %57 : vector<1x256xf32> to vector<2x256xf32>
    %59 = arith.mulf %58, %53 : vector<2x256xf32>
    %60 = vector.broadcast %55 : vector<2x1xf32> to vector<2x256xf32>
    %61 = arith.mulf %60, %59 : vector<2x256xf32>
    %62 = arith.addf %52, %61 : vector<2x256xf32>
    %c1_i32 = arith.constant 1 : i32
    %63 = tpu.dynamic_rotate %28 by %c1_i32 dim 1 : vector<2x256xf32>, i32 -> vector<2x256xf32>
    %c3_46 = arith.constant 3 : index
    %c0_47 = arith.constant 0 : index
    %c0_48 = arith.constant 0 : index
    %64 = vector.load %arg4[%c3_46, %c0_47, %c0_48] : memref<36x2x1xf32, #tpu.memory_space<vmem>>, vector<1x2x1xf32>
    %65 = vector.shape_cast %64 : vector<1x2x1xf32> to vector<2x1xf32>
    %c3_49 = arith.constant 3 : index
    %c0_50 = arith.constant 0 : index
    %c0_51 = arith.constant 0 : index
    %66 = vector.load %arg3[%c3_49, %c0_50, %c0_51] : memref<36x1x256xf32, #tpu.memory_space<vmem>>, vector<1x1x256xf32>
    %67 = vector.shape_cast %66 : vector<1x1x256xf32> to vector<1x256xf32>
    %68 = vector.broadcast %67 : vector<1x256xf32> to vector<2x256xf32>
    %69 = arith.mulf %68, %63 : vector<2x256xf32>
    %70 = vector.broadcast %65 : vector<2x1xf32> to vector<2x256xf32>
    %71 = arith.mulf %70, %69 : vector<2x256xf32>
    %72 = arith.addf %62, %71 : vector<2x256xf32>
    %c255_i32 = arith.constant 255 : i32
    %73 = tpu.dynamic_rotate %28 by %c255_i32 dim 1 : vector<2x256xf32>, i32 -> vector<2x256xf32>
    %c5_52 = arith.constant 5 : index
    %c0_53 = arith.constant 0 : index
    %c0_54 = arith.constant 0 : index
    %74 = vector.load %arg4[%c5_52, %c0_53, %c0_54] : memref<36x2x1xf32, #tpu.memory_space<vmem>>, vector<1x2x1xf32>
    %75 = vector.shape_cast %74 : vector<1x2x1xf32> to vector<2x1xf32>
    %c5_55 = arith.constant 5 : index
    %c0_56 = arith.constant 0 : index
    %c0_57 = arith.constant 0 : index
    %76 = vector.load %arg3[%c5_55, %c0_56, %c0_57] : memref<36x1x256xf32, #tpu.memory_space<vmem>>, vector<1x1x256xf32>
    %77 = vector.shape_cast %76 : vector<1x1x256xf32> to vector<1x256xf32>
    %78 = vector.broadcast %77 : vector<1x256xf32> to vector<2x256xf32>
    %79 = arith.mulf %78, %73 : vector<2x256xf32>
    %80 = vector.broadcast %75 : vector<2x1xf32> to vector<2x256xf32>
    %81 = arith.mulf %80, %79 : vector<2x256xf32>
    %82 = arith.addf %72, %81 : vector<2x256xf32>
    %c241_i32 = arith.constant 241 : i32
    %83 = tpu.dynamic_rotate %28 by %c241_i32 dim 1 : vector<2x256xf32>, i32 -> vector<2x256xf32>
    %c6 = arith.constant 6 : index
    %c0_58 = arith.constant 0 : index
    %c0_59 = arith.constant 0 : index
    %84 = vector.load %arg4[%c6, %c0_58, %c0_59] : memref<36x2x1xf32, #tpu.memory_space<vmem>>, vector<1x2x1xf32>
    %85 = vector.shape_cast %84 : vector<1x2x1xf32> to vector<2x1xf32>
    %c6_60 = arith.constant 6 : index
    %c0_61 = arith.constant 0 : index
    %c0_62 = arith.constant 0 : index
    %86 = vector.load %arg3[%c6_60, %c0_61, %c0_62] : memref<36x1x256xf32, #tpu.memory_space<vmem>>, vector<1x1x256xf32>
    %87 = vector.shape_cast %86 : vector<1x1x256xf32> to vector<1x256xf32>
    %88 = vector.broadcast %87 : vector<1x256xf32> to vector<2x256xf32>
    %89 = arith.mulf %88, %83 : vector<2x256xf32>
    %90 = vector.broadcast %85 : vector<2x1xf32> to vector<2x256xf32>
    %91 = arith.mulf %90, %89 : vector<2x256xf32>
    %92 = arith.addf %82, %91 : vector<2x256xf32>
    %c240_i32 = arith.constant 240 : i32
    %93 = tpu.dynamic_rotate %28 by %c240_i32 dim 1 : vector<2x256xf32>, i32 -> vector<2x256xf32>
    %c7 = arith.constant 7 : index
    %c0_63 = arith.constant 0 : index
    %c0_64 = arith.constant 0 : index
    %94 = vector.load %arg4[%c7, %c0_63, %c0_64] : memref<36x2x1xf32, #tpu.memory_space<vmem>>, vector<1x2x1xf32>
    %95 = vector.shape_cast %94 : vector<1x2x1xf32> to vector<2x1xf32>
    %c7_65 = arith.constant 7 : index
    %c0_66 = arith.constant 0 : index
    %c0_67 = arith.constant 0 : index
    %96 = vector.load %arg3[%c7_65, %c0_66, %c0_67] : memref<36x1x256xf32, #tpu.memory_space<vmem>>, vector<1x1x256xf32>
    %97 = vector.shape_cast %96 : vector<1x1x256xf32> to vector<1x256xf32>
    %98 = vector.broadcast %97 : vector<1x256xf32> to vector<2x256xf32>
    %99 = arith.mulf %98, %93 : vector<2x256xf32>
    %100 = vector.broadcast %95 : vector<2x1xf32> to vector<2x256xf32>
    %101 = arith.mulf %100, %99 : vector<2x256xf32>
    %102 = arith.addf %92, %101 : vector<2x256xf32>
    %c239_i32 = arith.constant 239 : i32
    %103 = tpu.dynamic_rotate %28 by %c239_i32 dim 1 : vector<2x256xf32>, i32 -> vector<2x256xf32>
    %c8 = arith.constant 8 : index
    %c0_68 = arith.constant 0 : index
    %c0_69 = arith.constant 0 : index
    %104 = vector.load %arg4[%c8, %c0_68, %c0_69] : memref<36x2x1xf32, #tpu.memory_space<vmem>>, vector<1x2x1xf32>
    %105 = vector.shape_cast %104 : vector<1x2x1xf32> to vector<2x1xf32>
    %c8_70 = arith.constant 8 : index
    %c0_71 = arith.constant 0 : index
    %c0_72 = arith.constant 0 : index
    %106 = vector.load %arg3[%c8_70, %c0_71, %c0_72] : memref<36x1x256xf32, #tpu.memory_space<vmem>>, vector<1x1x256xf32>
    %107 = vector.shape_cast %106 : vector<1x1x256xf32> to vector<1x256xf32>
    %108 = vector.broadcast %107 : vector<1x256xf32> to vector<2x256xf32>
    %109 = arith.mulf %108, %103 : vector<2x256xf32>
    %110 = vector.broadcast %105 : vector<2x1xf32> to vector<2x256xf32>
    %111 = arith.mulf %110, %109 : vector<2x256xf32>
    %112 = arith.addf %102, %111 : vector<2x256xf32>
    %113 = vector.extract_strided_slice %27 {offsets = [2, 0], sizes = [2, 256], strides = [1, 1]} : vector<8x256xf32> to vector<2x256xf32>
    %c255_i32_73 = arith.constant 255 : i32
    %114 = tpu.dynamic_rotate %113 by %c255_i32_73 dim 1 : vector<2x256xf32>, i32 -> vector<2x256xf32>
    %c1_i32_74 = arith.constant 1 : i32
    %115 = tpu.dynamic_rotate %113 by %c1_i32_74 dim 1 : vector<2x256xf32>, i32 -> vector<2x256xf32>
    %116 = vector.shape_cast %5 : vector<1x256xi1> to vector<1x256xi1>
    %117 = vector.broadcast %116 : vector<1x256xi1> to vector<2x256xi1>
    %118 = arith.select %117, %114, %115 : vector<2x256xi1>, vector<2x256xf32>
    %119 = arith.maximumf %113, %118 : vector<2x256xf32>
    %c240_i32_75 = arith.constant 240 : i32
    %120 = tpu.dynamic_rotate %119 by %c240_i32_75 dim 1 : vector<2x256xf32>, i32 -> vector<2x256xf32>
    %c16_i32_76 = arith.constant 16 : i32
    %121 = tpu.dynamic_rotate %119 by %c16_i32_76 dim 1 : vector<2x256xf32>, i32 -> vector<2x256xf32>
    %122 = vector.shape_cast %9 : vector<1x256xi1> to vector<1x256xi1>
    %123 = vector.broadcast %122 : vector<1x256xi1> to vector<2x256xi1>
    %124 = arith.select %123, %120, %121 : vector<2x256xi1>, vector<2x256xf32>
    %125 = arith.maximumf %119, %124 : vector<2x256xf32>
    %c13 = arith.constant 13 : index
    %c0_77 = arith.constant 0 : index
    %c0_78 = arith.constant 0 : index
    %126 = vector.load %arg4[%c13, %c0_77, %c0_78] : memref<36x2x1xf32, #tpu.memory_space<vmem>>, vector<1x2x1xf32>
    %127 = vector.shape_cast %126 : vector<1x2x1xf32> to vector<2x1xf32>
    %128 = vector.broadcast %127 : vector<2x1xf32> to vector<2x256xf32>
    %129 = arith.mulf %128, %125 : vector<2x256xf32>
    %c34_i32 = arith.constant 34 : i32
    %130 = tpu.dynamic_rotate %125 by %c34_i32 dim 1 : vector<2x256xf32>, i32 -> vector<2x256xf32>
    %c9 = arith.constant 9 : index
    %c0_79 = arith.constant 0 : index
    %c0_80 = arith.constant 0 : index
    %131 = vector.load %arg4[%c9, %c0_79, %c0_80] : memref<36x2x1xf32, #tpu.memory_space<vmem>>, vector<1x2x1xf32>
    %132 = vector.shape_cast %131 : vector<1x2x1xf32> to vector<2x1xf32>
    %c9_81 = arith.constant 9 : index
    %c0_82 = arith.constant 0 : index
    %c0_83 = arith.constant 0 : index
    %133 = vector.load %arg3[%c9_81, %c0_82, %c0_83] : memref<36x1x256xf32, #tpu.memory_space<vmem>>, vector<1x1x256xf32>
    %134 = vector.shape_cast %133 : vector<1x1x256xf32> to vector<1x256xf32>
    %135 = vector.broadcast %134 : vector<1x256xf32> to vector<2x256xf32>
    %136 = arith.mulf %135, %130 : vector<2x256xf32>
    %137 = vector.broadcast %132 : vector<2x1xf32> to vector<2x256xf32>
    %138 = arith.mulf %137, %136 : vector<2x256xf32>
    %139 = arith.addf %129, %138 : vector<2x256xf32>
    %c32_i32 = arith.constant 32 : i32
    %140 = tpu.dynamic_rotate %125 by %c32_i32 dim 1 : vector<2x256xf32>, i32 -> vector<2x256xf32>
    %c10 = arith.constant 10 : index
    %c0_84 = arith.constant 0 : index
    %c0_85 = arith.constant 0 : index
    %141 = vector.load %arg4[%c10, %c0_84, %c0_85] : memref<36x2x1xf32, #tpu.memory_space<vmem>>, vector<1x2x1xf32>
    %142 = vector.shape_cast %141 : vector<1x2x1xf32> to vector<2x1xf32>
    %c10_86 = arith.constant 10 : index
    %c0_87 = arith.constant 0 : index
    %c0_88 = arith.constant 0 : index
    %143 = vector.load %arg3[%c10_86, %c0_87, %c0_88] : memref<36x1x256xf32, #tpu.memory_space<vmem>>, vector<1x1x256xf32>
    %144 = vector.shape_cast %143 : vector<1x1x256xf32> to vector<1x256xf32>
    %145 = vector.broadcast %144 : vector<1x256xf32> to vector<2x256xf32>
    %146 = arith.mulf %145, %140 : vector<2x256xf32>
    %147 = vector.broadcast %142 : vector<2x1xf32> to vector<2x256xf32>
    %148 = arith.mulf %147, %146 : vector<2x256xf32>
    %149 = arith.addf %139, %148 : vector<2x256xf32>
    %c30_i32 = arith.constant 30 : i32
    %150 = tpu.dynamic_rotate %125 by %c30_i32 dim 1 : vector<2x256xf32>, i32 -> vector<2x256xf32>
    %c11 = arith.constant 11 : index
    %c0_89 = arith.constant 0 : index
    %c0_90 = arith.constant 0 : index
    %151 = vector.load %arg4[%c11, %c0_89, %c0_90] : memref<36x2x1xf32, #tpu.memory_space<vmem>>, vector<1x2x1xf32>
    %152 = vector.shape_cast %151 : vector<1x2x1xf32> to vector<2x1xf32>
    %c11_91 = arith.constant 11 : index
    %c0_92 = arith.constant 0 : index
    %c0_93 = arith.constant 0 : index
    %153 = vector.load %arg3[%c11_91, %c0_92, %c0_93] : memref<36x1x256xf32, #tpu.memory_space<vmem>>, vector<1x1x256xf32>
    %154 = vector.shape_cast %153 : vector<1x1x256xf32> to vector<1x256xf32>
    %155 = vector.broadcast %154 : vector<1x256xf32> to vector<2x256xf32>
    %156 = arith.mulf %155, %150 : vector<2x256xf32>
    %157 = vector.broadcast %152 : vector<2x1xf32> to vector<2x256xf32>
    %158 = arith.mulf %157, %156 : vector<2x256xf32>
    %159 = arith.addf %149, %158 : vector<2x256xf32>
    %c2_i32 = arith.constant 2 : i32
    %160 = tpu.dynamic_rotate %125 by %c2_i32 dim 1 : vector<2x256xf32>, i32 -> vector<2x256xf32>
    %c12 = arith.constant 12 : index
    %c0_94 = arith.constant 0 : index
    %c0_95 = arith.constant 0 : index
    %161 = vector.load %arg4[%c12, %c0_94, %c0_95] : memref<36x2x1xf32, #tpu.memory_space<vmem>>, vector<1x2x1xf32>
    %162 = vector.shape_cast %161 : vector<1x2x1xf32> to vector<2x1xf32>
    %c12_96 = arith.constant 12 : index
    %c0_97 = arith.constant 0 : index
    %c0_98 = arith.constant 0 : index
    %163 = vector.load %arg3[%c12_96, %c0_97, %c0_98] : memref<36x1x256xf32, #tpu.memory_space<vmem>>, vector<1x1x256xf32>
    %164 = vector.shape_cast %163 : vector<1x1x256xf32> to vector<1x256xf32>
    %165 = vector.broadcast %164 : vector<1x256xf32> to vector<2x256xf32>
    %166 = arith.mulf %165, %160 : vector<2x256xf32>
    %167 = vector.broadcast %162 : vector<2x1xf32> to vector<2x256xf32>
    %168 = arith.mulf %167, %166 : vector<2x256xf32>
    %169 = arith.addf %159, %168 : vector<2x256xf32>
    %c254_i32 = arith.constant 254 : i32
    %170 = tpu.dynamic_rotate %125 by %c254_i32 dim 1 : vector<2x256xf32>, i32 -> vector<2x256xf32>
    %c14 = arith.constant 14 : index
    %c0_99 = arith.constant 0 : index
    %c0_100 = arith.constant 0 : index
    %171 = vector.load %arg4[%c14, %c0_99, %c0_100] : memref<36x2x1xf32, #tpu.memory_space<vmem>>, vector<1x2x1xf32>
    %172 = vector.shape_cast %171 : vector<1x2x1xf32> to vector<2x1xf32>
    %c14_101 = arith.constant 14 : index
    %c0_102 = arith.constant 0 : index
    %c0_103 = arith.constant 0 : index
    %173 = vector.load %arg3[%c14_101, %c0_102, %c0_103] : memref<36x1x256xf32, #tpu.memory_space<vmem>>, vector<1x1x256xf32>
    %174 = vector.shape_cast %173 : vector<1x1x256xf32> to vector<1x256xf32>
    %175 = vector.broadcast %174 : vector<1x256xf32> to vector<2x256xf32>
    %176 = arith.mulf %175, %170 : vector<2x256xf32>
    %177 = vector.broadcast %172 : vector<2x1xf32> to vector<2x256xf32>
    %178 = arith.mulf %177, %176 : vector<2x256xf32>
    %179 = arith.addf %169, %178 : vector<2x256xf32>
    %c226_i32 = arith.constant 226 : i32
    %180 = tpu.dynamic_rotate %125 by %c226_i32 dim 1 : vector<2x256xf32>, i32 -> vector<2x256xf32>
    %c15 = arith.constant 15 : index
    %c0_104 = arith.constant 0 : index
    %c0_105 = arith.constant 0 : index
    %181 = vector.load %arg4[%c15, %c0_104, %c0_105] : memref<36x2x1xf32, #tpu.memory_space<vmem>>, vector<1x2x1xf32>
    %182 = vector.shape_cast %181 : vector<1x2x1xf32> to vector<2x1xf32>
    %c15_106 = arith.constant 15 : index
    %c0_107 = arith.constant 0 : index
    %c0_108 = arith.constant 0 : index
    %183 = vector.load %arg3[%c15_106, %c0_107, %c0_108] : memref<36x1x256xf32, #tpu.memory_space<vmem>>, vector<1x1x256xf32>
    %184 = vector.shape_cast %183 : vector<1x1x256xf32> to vector<1x256xf32>
    %185 = vector.broadcast %184 : vector<1x256xf32> to vector<2x256xf32>
    %186 = arith.mulf %185, %180 : vector<2x256xf32>
    %187 = vector.broadcast %182 : vector<2x1xf32> to vector<2x256xf32>
    %188 = arith.mulf %187, %186 : vector<2x256xf32>
    %189 = arith.addf %179, %188 : vector<2x256xf32>
    %c224_i32 = arith.constant 224 : i32
    %190 = tpu.dynamic_rotate %125 by %c224_i32 dim 1 : vector<2x256xf32>, i32 -> vector<2x256xf32>
    %c16 = arith.constant 16 : index
    %c0_109 = arith.constant 0 : index
    %c0_110 = arith.constant 0 : index
    %191 = vector.load %arg4[%c16, %c0_109, %c0_110] : memref<36x2x1xf32, #tpu.memory_space<vmem>>, vector<1x2x1xf32>
    %192 = vector.shape_cast %191 : vector<1x2x1xf32> to vector<2x1xf32>
    %c16_111 = arith.constant 16 : index
    %c0_112 = arith.constant 0 : index
    %c0_113 = arith.constant 0 : index
    %193 = vector.load %arg3[%c16_111, %c0_112, %c0_113] : memref<36x1x256xf32, #tpu.memory_space<vmem>>, vector<1x1x256xf32>
    %194 = vector.shape_cast %193 : vector<1x1x256xf32> to vector<1x256xf32>
    %195 = vector.broadcast %194 : vector<1x256xf32> to vector<2x256xf32>
    %196 = arith.mulf %195, %190 : vector<2x256xf32>
    %197 = vector.broadcast %192 : vector<2x1xf32> to vector<2x256xf32>
    %198 = arith.mulf %197, %196 : vector<2x256xf32>
    %199 = arith.addf %189, %198 : vector<2x256xf32>
    %c222_i32 = arith.constant 222 : i32
    %200 = tpu.dynamic_rotate %125 by %c222_i32 dim 1 : vector<2x256xf32>, i32 -> vector<2x256xf32>
    %c17 = arith.constant 17 : index
    %c0_114 = arith.constant 0 : index
    %c0_115 = arith.constant 0 : index
    %201 = vector.load %arg4[%c17, %c0_114, %c0_115] : memref<36x2x1xf32, #tpu.memory_space<vmem>>, vector<1x2x1xf32>
    %202 = vector.shape_cast %201 : vector<1x2x1xf32> to vector<2x1xf32>
    %c17_116 = arith.constant 17 : index
    %c0_117 = arith.constant 0 : index
    %c0_118 = arith.constant 0 : index
    %203 = vector.load %arg3[%c17_116, %c0_117, %c0_118] : memref<36x1x256xf32, #tpu.memory_space<vmem>>, vector<1x1x256xf32>
    %204 = vector.shape_cast %203 : vector<1x1x256xf32> to vector<1x256xf32>
    %205 = vector.broadcast %204 : vector<1x256xf32> to vector<2x256xf32>
    %206 = arith.mulf %205, %200 : vector<2x256xf32>
    %207 = vector.broadcast %202 : vector<2x1xf32> to vector<2x256xf32>
    %208 = arith.mulf %207, %206 : vector<2x256xf32>
    %209 = arith.addf %199, %208 : vector<2x256xf32>
    %210 = vector.extract_strided_slice %27 {offsets = [4, 0], sizes = [2, 256], strides = [1, 1]} : vector<8x256xf32> to vector<2x256xf32>
    %c255_i32_119 = arith.constant 255 : i32
    %211 = tpu.dynamic_rotate %210 by %c255_i32_119 dim 1 : vector<2x256xf32>, i32 -> vector<2x256xf32>
    %c1_i32_120 = arith.constant 1 : i32
    %212 = tpu.dynamic_rotate %210 by %c1_i32_120 dim 1 : vector<2x256xf32>, i32 -> vector<2x256xf32>
    %213 = vector.shape_cast %5 : vector<1x256xi1> to vector<1x256xi1>
    %214 = vector.broadcast %213 : vector<1x256xi1> to vector<2x256xi1>
    %215 = arith.select %214, %211, %212 : vector<2x256xi1>, vector<2x256xf32>
    %216 = arith.maximumf %210, %215 : vector<2x256xf32>
    %c240_i32_121 = arith.constant 240 : i32
    %217 = tpu.dynamic_rotate %216 by %c240_i32_121 dim 1 : vector<2x256xf32>, i32 -> vector<2x256xf32>
    %c16_i32_122 = arith.constant 16 : i32
    %218 = tpu.dynamic_rotate %216 by %c16_i32_122 dim 1 : vector<2x256xf32>, i32 -> vector<2x256xf32>
    %219 = vector.shape_cast %9 : vector<1x256xi1> to vector<1x256xi1>
    %220 = vector.broadcast %219 : vector<1x256xi1> to vector<2x256xi1>
    %221 = arith.select %220, %217, %218 : vector<2x256xi1>, vector<2x256xf32>
    %222 = arith.maximumf %216, %221 : vector<2x256xf32>
    %c254_i32_123 = arith.constant 254 : i32
    %223 = tpu.dynamic_rotate %222 by %c254_i32_123 dim 1 : vector<2x256xf32>, i32 -> vector<2x256xf32>
    %c2_i32_124 = arith.constant 2 : i32
    %224 = tpu.dynamic_rotate %222 by %c2_i32_124 dim 1 : vector<2x256xf32>, i32 -> vector<2x256xf32>
    %225 = vector.shape_cast %13 : vector<1x256xi1> to vector<1x256xi1>
    %226 = vector.broadcast %225 : vector<1x256xi1> to vector<2x256xi1>
    %227 = arith.select %226, %223, %224 : vector<2x256xi1>, vector<2x256xf32>
    %228 = arith.maximumf %222, %227 : vector<2x256xf32>
    %c224_i32_125 = arith.constant 224 : i32
    %229 = tpu.dynamic_rotate %228 by %c224_i32_125 dim 1 : vector<2x256xf32>, i32 -> vector<2x256xf32>
    %c32_i32_126 = arith.constant 32 : i32
    %230 = tpu.dynamic_rotate %228 by %c32_i32_126 dim 1 : vector<2x256xf32>, i32 -> vector<2x256xf32>
    %231 = vector.shape_cast %17 : vector<1x256xi1> to vector<1x256xi1>
    %232 = vector.broadcast %231 : vector<1x256xi1> to vector<2x256xi1>
    %233 = arith.select %232, %229, %230 : vector<2x256xi1>, vector<2x256xf32>
    %234 = arith.maximumf %228, %233 : vector<2x256xf32>
    %c22 = arith.constant 22 : index
    %c0_127 = arith.constant 0 : index
    %c0_128 = arith.constant 0 : index
    %235 = vector.load %arg4[%c22, %c0_127, %c0_128] : memref<36x2x1xf32, #tpu.memory_space<vmem>>, vector<1x2x1xf32>
    %236 = vector.shape_cast %235 : vector<1x2x1xf32> to vector<2x1xf32>
    %237 = vector.broadcast %236 : vector<2x1xf32> to vector<2x256xf32>
    %238 = arith.mulf %237, %234 : vector<2x256xf32>
    %c68_i32 = arith.constant 68 : i32
    %239 = tpu.dynamic_rotate %234 by %c68_i32 dim 1 : vector<2x256xf32>, i32 -> vector<2x256xf32>
    %c18 = arith.constant 18 : index
    %c0_129 = arith.constant 0 : index
    %c0_130 = arith.constant 0 : index
    %240 = vector.load %arg4[%c18, %c0_129, %c0_130] : memref<36x2x1xf32, #tpu.memory_space<vmem>>, vector<1x2x1xf32>
    %241 = vector.shape_cast %240 : vector<1x2x1xf32> to vector<2x1xf32>
    %c18_131 = arith.constant 18 : index
    %c0_132 = arith.constant 0 : index
    %c0_133 = arith.constant 0 : index
    %242 = vector.load %arg3[%c18_131, %c0_132, %c0_133] : memref<36x1x256xf32, #tpu.memory_space<vmem>>, vector<1x1x256xf32>
    %243 = vector.shape_cast %242 : vector<1x1x256xf32> to vector<1x256xf32>
    %244 = vector.broadcast %243 : vector<1x256xf32> to vector<2x256xf32>
    %245 = arith.mulf %244, %239 : vector<2x256xf32>
    %246 = vector.broadcast %241 : vector<2x1xf32> to vector<2x256xf32>
    %247 = arith.mulf %246, %245 : vector<2x256xf32>
    %248 = arith.addf %238, %247 : vector<2x256xf32>
    %c64_i32 = arith.constant 64 : i32
    %249 = tpu.dynamic_rotate %234 by %c64_i32 dim 1 : vector<2x256xf32>, i32 -> vector<2x256xf32>
    %c19 = arith.constant 19 : index
    %c0_134 = arith.constant 0 : index
    %c0_135 = arith.constant 0 : index
    %250 = vector.load %arg4[%c19, %c0_134, %c0_135] : memref<36x2x1xf32, #tpu.memory_space<vmem>>, vector<1x2x1xf32>
    %251 = vector.shape_cast %250 : vector<1x2x1xf32> to vector<2x1xf32>
    %c19_136 = arith.constant 19 : index
    %c0_137 = arith.constant 0 : index
    %c0_138 = arith.constant 0 : index
    %252 = vector.load %arg3[%c19_136, %c0_137, %c0_138] : memref<36x1x256xf32, #tpu.memory_space<vmem>>, vector<1x1x256xf32>
    %253 = vector.shape_cast %252 : vector<1x1x256xf32> to vector<1x256xf32>
    %254 = vector.broadcast %253 : vector<1x256xf32> to vector<2x256xf32>
    %255 = arith.mulf %254, %249 : vector<2x256xf32>
    %256 = vector.broadcast %251 : vector<2x1xf32> to vector<2x256xf32>
    %257 = arith.mulf %256, %255 : vector<2x256xf32>
    %258 = arith.addf %248, %257 : vector<2x256xf32>
    %c60_i32 = arith.constant 60 : i32
    %259 = tpu.dynamic_rotate %234 by %c60_i32 dim 1 : vector<2x256xf32>, i32 -> vector<2x256xf32>
    %c20 = arith.constant 20 : index
    %c0_139 = arith.constant 0 : index
    %c0_140 = arith.constant 0 : index
    %260 = vector.load %arg4[%c20, %c0_139, %c0_140] : memref<36x2x1xf32, #tpu.memory_space<vmem>>, vector<1x2x1xf32>
    %261 = vector.shape_cast %260 : vector<1x2x1xf32> to vector<2x1xf32>
    %c20_141 = arith.constant 20 : index
    %c0_142 = arith.constant 0 : index
    %c0_143 = arith.constant 0 : index
    %262 = vector.load %arg3[%c20_141, %c0_142, %c0_143] : memref<36x1x256xf32, #tpu.memory_space<vmem>>, vector<1x1x256xf32>
    %263 = vector.shape_cast %262 : vector<1x1x256xf32> to vector<1x256xf32>
    %264 = vector.broadcast %263 : vector<1x256xf32> to vector<2x256xf32>
    %265 = arith.mulf %264, %259 : vector<2x256xf32>
    %266 = vector.broadcast %261 : vector<2x1xf32> to vector<2x256xf32>
    %267 = arith.mulf %266, %265 : vector<2x256xf32>
    %268 = arith.addf %258, %267 : vector<2x256xf32>
    %c4_i32 = arith.constant 4 : i32
    %269 = tpu.dynamic_rotate %234 by %c4_i32 dim 1 : vector<2x256xf32>, i32 -> vector<2x256xf32>
    %c21 = arith.constant 21 : index
    %c0_144 = arith.constant 0 : index
    %c0_145 = arith.constant 0 : index
    %270 = vector.load %arg4[%c21, %c0_144, %c0_145] : memref<36x2x1xf32, #tpu.memory_space<vmem>>, vector<1x2x1xf32>
    %271 = vector.shape_cast %270 : vector<1x2x1xf32> to vector<2x1xf32>
    %c21_146 = arith.constant 21 : index
    %c0_147 = arith.constant 0 : index
    %c0_148 = arith.constant 0 : index
    %272 = vector.load %arg3[%c21_146, %c0_147, %c0_148] : memref<36x1x256xf32, #tpu.memory_space<vmem>>, vector<1x1x256xf32>
    %273 = vector.shape_cast %272 : vector<1x1x256xf32> to vector<1x256xf32>
    %274 = vector.broadcast %273 : vector<1x256xf32> to vector<2x256xf32>
    %275 = arith.mulf %274, %269 : vector<2x256xf32>
    %276 = vector.broadcast %271 : vector<2x1xf32> to vector<2x256xf32>
    %277 = arith.mulf %276, %275 : vector<2x256xf32>
    %278 = arith.addf %268, %277 : vector<2x256xf32>
    %c252_i32 = arith.constant 252 : i32
    %279 = tpu.dynamic_rotate %234 by %c252_i32 dim 1 : vector<2x256xf32>, i32 -> vector<2x256xf32>
    %c23 = arith.constant 23 : index
    %c0_149 = arith.constant 0 : index
    %c0_150 = arith.constant 0 : index
    %280 = vector.load %arg4[%c23, %c0_149, %c0_150] : memref<36x2x1xf32, #tpu.memory_space<vmem>>, vector<1x2x1xf32>
    %281 = vector.shape_cast %280 : vector<1x2x1xf32> to vector<2x1xf32>
    %c23_151 = arith.constant 23 : index
    %c0_152 = arith.constant 0 : index
    %c0_153 = arith.constant 0 : index
    %282 = vector.load %arg3[%c23_151, %c0_152, %c0_153] : memref<36x1x256xf32, #tpu.memory_space<vmem>>, vector<1x1x256xf32>
    %283 = vector.shape_cast %282 : vector<1x1x256xf32> to vector<1x256xf32>
    %284 = vector.broadcast %283 : vector<1x256xf32> to vector<2x256xf32>
    %285 = arith.mulf %284, %279 : vector<2x256xf32>
    %286 = vector.broadcast %281 : vector<2x1xf32> to vector<2x256xf32>
    %287 = arith.mulf %286, %285 : vector<2x256xf32>
    %288 = arith.addf %278, %287 : vector<2x256xf32>
    %c196_i32 = arith.constant 196 : i32
    %289 = tpu.dynamic_rotate %234 by %c196_i32 dim 1 : vector<2x256xf32>, i32 -> vector<2x256xf32>
    %c24 = arith.constant 24 : index
    %c0_154 = arith.constant 0 : index
    %c0_155 = arith.constant 0 : index
    %290 = vector.load %arg4[%c24, %c0_154, %c0_155] : memref<36x2x1xf32, #tpu.memory_space<vmem>>, vector<1x2x1xf32>
    %291 = vector.shape_cast %290 : vector<1x2x1xf32> to vector<2x1xf32>
    %c24_156 = arith.constant 24 : index
    %c0_157 = arith.constant 0 : index
    %c0_158 = arith.constant 0 : index
    %292 = vector.load %arg3[%c24_156, %c0_157, %c0_158] : memref<36x1x256xf32, #tpu.memory_space<vmem>>, vector<1x1x256xf32>
    %293 = vector.shape_cast %292 : vector<1x1x256xf32> to vector<1x256xf32>
    %294 = vector.broadcast %293 : vector<1x256xf32> to vector<2x256xf32>
    %295 = arith.mulf %294, %289 : vector<2x256xf32>
    %296 = vector.broadcast %291 : vector<2x1xf32> to vector<2x256xf32>
    %297 = arith.mulf %296, %295 : vector<2x256xf32>
    %298 = arith.addf %288, %297 : vector<2x256xf32>
    %c192_i32 = arith.constant 192 : i32
    %299 = tpu.dynamic_rotate %234 by %c192_i32 dim 1 : vector<2x256xf32>, i32 -> vector<2x256xf32>
    %c25 = arith.constant 25 : index
    %c0_159 = arith.constant 0 : index
    %c0_160 = arith.constant 0 : index
    %300 = vector.load %arg4[%c25, %c0_159, %c0_160] : memref<36x2x1xf32, #tpu.memory_space<vmem>>, vector<1x2x1xf32>
    %301 = vector.shape_cast %300 : vector<1x2x1xf32> to vector<2x1xf32>
    %c25_161 = arith.constant 25 : index
    %c0_162 = arith.constant 0 : index
    %c0_163 = arith.constant 0 : index
    %302 = vector.load %arg3[%c25_161, %c0_162, %c0_163] : memref<36x1x256xf32, #tpu.memory_space<vmem>>, vector<1x1x256xf32>
    %303 = vector.shape_cast %302 : vector<1x1x256xf32> to vector<1x256xf32>
    %304 = vector.broadcast %303 : vector<1x256xf32> to vector<2x256xf32>
    %305 = arith.mulf %304, %299 : vector<2x256xf32>
    %306 = vector.broadcast %301 : vector<2x1xf32> to vector<2x256xf32>
    %307 = arith.mulf %306, %305 : vector<2x256xf32>
    %308 = arith.addf %298, %307 : vector<2x256xf32>
    %c188_i32 = arith.constant 188 : i32
    %309 = tpu.dynamic_rotate %234 by %c188_i32 dim 1 : vector<2x256xf32>, i32 -> vector<2x256xf32>
    %c26 = arith.constant 26 : index
    %c0_164 = arith.constant 0 : index
    %c0_165 = arith.constant 0 : index
    %310 = vector.load %arg4[%c26, %c0_164, %c0_165] : memref<36x2x1xf32, #tpu.memory_space<vmem>>, vector<1x2x1xf32>
    %311 = vector.shape_cast %310 : vector<1x2x1xf32> to vector<2x1xf32>
    %c26_166 = arith.constant 26 : index
    %c0_167 = arith.constant 0 : index
    %c0_168 = arith.constant 0 : index
    %312 = vector.load %arg3[%c26_166, %c0_167, %c0_168] : memref<36x1x256xf32, #tpu.memory_space<vmem>>, vector<1x1x256xf32>
    %313 = vector.shape_cast %312 : vector<1x1x256xf32> to vector<1x256xf32>
    %314 = vector.broadcast %313 : vector<1x256xf32> to vector<2x256xf32>
    %315 = arith.mulf %314, %309 : vector<2x256xf32>
    %316 = vector.broadcast %311 : vector<2x1xf32> to vector<2x256xf32>
    %317 = arith.mulf %316, %315 : vector<2x256xf32>
    %318 = arith.addf %308, %317 : vector<2x256xf32>
    %319 = vector.extract_strided_slice %27 {offsets = [6, 0], sizes = [2, 256], strides = [1, 1]} : vector<8x256xf32> to vector<2x256xf32>
    %c255_i32_169 = arith.constant 255 : i32
    %320 = tpu.dynamic_rotate %319 by %c255_i32_169 dim 1 : vector<2x256xf32>, i32 -> vector<2x256xf32>
    %c1_i32_170 = arith.constant 1 : i32
    %321 = tpu.dynamic_rotate %319 by %c1_i32_170 dim 1 : vector<2x256xf32>, i32 -> vector<2x256xf32>
    %322 = vector.shape_cast %5 : vector<1x256xi1> to vector<1x256xi1>
    %323 = vector.broadcast %322 : vector<1x256xi1> to vector<2x256xi1>
    %324 = arith.select %323, %320, %321 : vector<2x256xi1>, vector<2x256xf32>
    %325 = arith.maximumf %319, %324 : vector<2x256xf32>
    %c240_i32_171 = arith.constant 240 : i32
    %326 = tpu.dynamic_rotate %325 by %c240_i32_171 dim 1 : vector<2x256xf32>, i32 -> vector<2x256xf32>
    %c16_i32_172 = arith.constant 16 : i32
    %327 = tpu.dynamic_rotate %325 by %c16_i32_172 dim 1 : vector<2x256xf32>, i32 -> vector<2x256xf32>
    %328 = vector.shape_cast %9 : vector<1x256xi1> to vector<1x256xi1>
    %329 = vector.broadcast %328 : vector<1x256xi1> to vector<2x256xi1>
    %330 = arith.select %329, %326, %327 : vector<2x256xi1>, vector<2x256xf32>
    %331 = arith.maximumf %325, %330 : vector<2x256xf32>
    %c254_i32_173 = arith.constant 254 : i32
    %332 = tpu.dynamic_rotate %331 by %c254_i32_173 dim 1 : vector<2x256xf32>, i32 -> vector<2x256xf32>
    %c2_i32_174 = arith.constant 2 : i32
    %333 = tpu.dynamic_rotate %331 by %c2_i32_174 dim 1 : vector<2x256xf32>, i32 -> vector<2x256xf32>
    %334 = vector.shape_cast %13 : vector<1x256xi1> to vector<1x256xi1>
    %335 = vector.broadcast %334 : vector<1x256xi1> to vector<2x256xi1>
    %336 = arith.select %335, %332, %333 : vector<2x256xi1>, vector<2x256xf32>
    %337 = arith.maximumf %331, %336 : vector<2x256xf32>
    %c224_i32_175 = arith.constant 224 : i32
    %338 = tpu.dynamic_rotate %337 by %c224_i32_175 dim 1 : vector<2x256xf32>, i32 -> vector<2x256xf32>
    %c32_i32_176 = arith.constant 32 : i32
    %339 = tpu.dynamic_rotate %337 by %c32_i32_176 dim 1 : vector<2x256xf32>, i32 -> vector<2x256xf32>
    %340 = vector.shape_cast %17 : vector<1x256xi1> to vector<1x256xi1>
    %341 = vector.broadcast %340 : vector<1x256xi1> to vector<2x256xi1>
    %342 = arith.select %341, %338, %339 : vector<2x256xi1>, vector<2x256xf32>
    %343 = arith.maximumf %337, %342 : vector<2x256xf32>
    %c252_i32_177 = arith.constant 252 : i32
    %344 = tpu.dynamic_rotate %343 by %c252_i32_177 dim 1 : vector<2x256xf32>, i32 -> vector<2x256xf32>
    %c4_i32_178 = arith.constant 4 : i32
    %345 = tpu.dynamic_rotate %343 by %c4_i32_178 dim 1 : vector<2x256xf32>, i32 -> vector<2x256xf32>
    %346 = vector.shape_cast %21 : vector<1x256xi1> to vector<1x256xi1>
    %347 = vector.broadcast %346 : vector<1x256xi1> to vector<2x256xi1>
    %348 = arith.select %347, %344, %345 : vector<2x256xi1>, vector<2x256xf32>
    %349 = arith.maximumf %343, %348 : vector<2x256xf32>
    %c192_i32_179 = arith.constant 192 : i32
    %350 = tpu.dynamic_rotate %349 by %c192_i32_179 dim 1 : vector<2x256xf32>, i32 -> vector<2x256xf32>
    %c64_i32_180 = arith.constant 64 : i32
    %351 = tpu.dynamic_rotate %349 by %c64_i32_180 dim 1 : vector<2x256xf32>, i32 -> vector<2x256xf32>
    %352 = vector.shape_cast %25 : vector<1x256xi1> to vector<1x256xi1>
    %353 = vector.broadcast %352 : vector<1x256xi1> to vector<2x256xi1>
    %354 = arith.select %353, %350, %351 : vector<2x256xi1>, vector<2x256xf32>
    %355 = arith.maximumf %349, %354 : vector<2x256xf32>
    %c31 = arith.constant 31 : index
    %c0_181 = arith.constant 0 : index
    %c0_182 = arith.constant 0 : index
    %356 = vector.load %arg4[%c31, %c0_181, %c0_182] : memref<36x2x1xf32, #tpu.memory_space<vmem>>, vector<1x2x1xf32>
    %357 = vector.shape_cast %356 : vector<1x2x1xf32> to vector<2x1xf32>
    %358 = vector.broadcast %357 : vector<2x1xf32> to vector<2x256xf32>
    %359 = arith.mulf %358, %355 : vector<2x256xf32>
    %c136_i32 = arith.constant 136 : i32
    %360 = tpu.dynamic_rotate %355 by %c136_i32 dim 1 : vector<2x256xf32>, i32 -> vector<2x256xf32>
    %c27 = arith.constant 27 : index
    %c0_183 = arith.constant 0 : index
    %c0_184 = arith.constant 0 : index
    %361 = vector.load %arg4[%c27, %c0_183, %c0_184] : memref<36x2x1xf32, #tpu.memory_space<vmem>>, vector<1x2x1xf32>
    %362 = vector.shape_cast %361 : vector<1x2x1xf32> to vector<2x1xf32>
    %c27_185 = arith.constant 27 : index
    %c0_186 = arith.constant 0 : index
    %c0_187 = arith.constant 0 : index
    %363 = vector.load %arg3[%c27_185, %c0_186, %c0_187] : memref<36x1x256xf32, #tpu.memory_space<vmem>>, vector<1x1x256xf32>
    %364 = vector.shape_cast %363 : vector<1x1x256xf32> to vector<1x256xf32>
    %365 = vector.broadcast %364 : vector<1x256xf32> to vector<2x256xf32>
    %366 = arith.mulf %365, %360 : vector<2x256xf32>
    %367 = vector.broadcast %362 : vector<2x1xf32> to vector<2x256xf32>
    %368 = arith.mulf %367, %366 : vector<2x256xf32>
    %369 = arith.addf %359, %368 : vector<2x256xf32>
    %c128_i32 = arith.constant 128 : i32
    %370 = tpu.dynamic_rotate %355 by %c128_i32 dim 1 : vector<2x256xf32>, i32 -> vector<2x256xf32>
    %c28 = arith.constant 28 : index
    %c0_188 = arith.constant 0 : index
    %c0_189 = arith.constant 0 : index
    %371 = vector.load %arg4[%c28, %c0_188, %c0_189] : memref<36x2x1xf32, #tpu.memory_space<vmem>>, vector<1x2x1xf32>
    %372 = vector.shape_cast %371 : vector<1x2x1xf32> to vector<2x1xf32>
    %c28_190 = arith.constant 28 : index
    %c0_191 = arith.constant 0 : index
    %c0_192 = arith.constant 0 : index
    %373 = vector.load %arg3[%c28_190, %c0_191, %c0_192] : memref<36x1x256xf32, #tpu.memory_space<vmem>>, vector<1x1x256xf32>
    %374 = vector.shape_cast %373 : vector<1x1x256xf32> to vector<1x256xf32>
    %375 = vector.broadcast %374 : vector<1x256xf32> to vector<2x256xf32>
    %376 = arith.mulf %375, %370 : vector<2x256xf32>
    %377 = vector.broadcast %372 : vector<2x1xf32> to vector<2x256xf32>
    %378 = arith.mulf %377, %376 : vector<2x256xf32>
    %379 = arith.addf %369, %378 : vector<2x256xf32>
    %c120_i32 = arith.constant 120 : i32
    %380 = tpu.dynamic_rotate %355 by %c120_i32 dim 1 : vector<2x256xf32>, i32 -> vector<2x256xf32>
    %c29 = arith.constant 29 : index
    %c0_193 = arith.constant 0 : index
    %c0_194 = arith.constant 0 : index
    %381 = vector.load %arg4[%c29, %c0_193, %c0_194] : memref<36x2x1xf32, #tpu.memory_space<vmem>>, vector<1x2x1xf32>
    %382 = vector.shape_cast %381 : vector<1x2x1xf32> to vector<2x1xf32>
    %c29_195 = arith.constant 29 : index
    %c0_196 = arith.constant 0 : index
    %c0_197 = arith.constant 0 : index
    %383 = vector.load %arg3[%c29_195, %c0_196, %c0_197] : memref<36x1x256xf32, #tpu.memory_space<vmem>>, vector<1x1x256xf32>
    %384 = vector.shape_cast %383 : vector<1x1x256xf32> to vector<1x256xf32>
    %385 = vector.broadcast %384 : vector<1x256xf32> to vector<2x256xf32>
    %386 = arith.mulf %385, %380 : vector<2x256xf32>
    %387 = vector.broadcast %382 : vector<2x1xf32> to vector<2x256xf32>
    %388 = arith.mulf %387, %386 : vector<2x256xf32>
    %389 = arith.addf %379, %388 : vector<2x256xf32>
    %c8_i32 = arith.constant 8 : i32
    %390 = tpu.dynamic_rotate %355 by %c8_i32 dim 1 : vector<2x256xf32>, i32 -> vector<2x256xf32>
    %c30 = arith.constant 30 : index
    %c0_198 = arith.constant 0 : index
    %c0_199 = arith.constant 0 : index
    %391 = vector.load %arg4[%c30, %c0_198, %c0_199] : memref<36x2x1xf32, #tpu.memory_space<vmem>>, vector<1x2x1xf32>
    %392 = vector.shape_cast %391 : vector<1x2x1xf32> to vector<2x1xf32>
    %c30_200 = arith.constant 30 : index
    %c0_201 = arith.constant 0 : index
    %c0_202 = arith.constant 0 : index
    %393 = vector.load %arg3[%c30_200, %c0_201, %c0_202] : memref<36x1x256xf32, #tpu.memory_space<vmem>>, vector<1x1x256xf32>
    %394 = vector.shape_cast %393 : vector<1x1x256xf32> to vector<1x256xf32>
    %395 = vector.broadcast %394 : vector<1x256xf32> to vector<2x256xf32>
    %396 = arith.mulf %395, %390 : vector<2x256xf32>
    %397 = vector.broadcast %392 : vector<2x1xf32> to vector<2x256xf32>
    %398 = arith.mulf %397, %396 : vector<2x256xf32>
    %399 = arith.addf %389, %398 : vector<2x256xf32>
    %c248_i32 = arith.constant 248 : i32
    %400 = tpu.dynamic_rotate %355 by %c248_i32 dim 1 : vector<2x256xf32>, i32 -> vector<2x256xf32>
    %c32 = arith.constant 32 : index
    %c0_203 = arith.constant 0 : index
    %c0_204 = arith.constant 0 : index
    %401 = vector.load %arg4[%c32, %c0_203, %c0_204] : memref<36x2x1xf32, #tpu.memory_space<vmem>>, vector<1x2x1xf32>
    %402 = vector.shape_cast %401 : vector<1x2x1xf32> to vector<2x1xf32>
    %c32_205 = arith.constant 32 : index
    %c0_206 = arith.constant 0 : index
    %c0_207 = arith.constant 0 : index
    %403 = vector.load %arg3[%c32_205, %c0_206, %c0_207] : memref<36x1x256xf32, #tpu.memory_space<vmem>>, vector<1x1x256xf32>
    %404 = vector.shape_cast %403 : vector<1x1x256xf32> to vector<1x256xf32>
    %405 = vector.broadcast %404 : vector<1x256xf32> to vector<2x256xf32>
    %406 = arith.mulf %405, %400 : vector<2x256xf32>
    %407 = vector.broadcast %402 : vector<2x1xf32> to vector<2x256xf32>
    %408 = arith.mulf %407, %406 : vector<2x256xf32>
    %409 = arith.addf %399, %408 : vector<2x256xf32>
    %c136_i32_208 = arith.constant 136 : i32
    %410 = tpu.dynamic_rotate %355 by %c136_i32_208 dim 1 : vector<2x256xf32>, i32 -> vector<2x256xf32>
    %c33 = arith.constant 33 : index
    %c0_209 = arith.constant 0 : index
    %c0_210 = arith.constant 0 : index
    %411 = vector.load %arg4[%c33, %c0_209, %c0_210] : memref<36x2x1xf32, #tpu.memory_space<vmem>>, vector<1x2x1xf32>
    %412 = vector.shape_cast %411 : vector<1x2x1xf32> to vector<2x1xf32>
    %c33_211 = arith.constant 33 : index
    %c0_212 = arith.constant 0 : index
    %c0_213 = arith.constant 0 : index
    %413 = vector.load %arg3[%c33_211, %c0_212, %c0_213] : memref<36x1x256xf32, #tpu.memory_space<vmem>>, vector<1x1x256xf32>
    %414 = vector.shape_cast %413 : vector<1x1x256xf32> to vector<1x256xf32>
    %415 = vector.broadcast %414 : vector<1x256xf32> to vector<2x256xf32>
    %416 = arith.mulf %415, %410 : vector<2x256xf32>
    %417 = vector.broadcast %412 : vector<2x1xf32> to vector<2x256xf32>
    %418 = arith.mulf %417, %416 : vector<2x256xf32>
    %419 = arith.addf %409, %418 : vector<2x256xf32>
    %c128_i32_214 = arith.constant 128 : i32
    %420 = tpu.dynamic_rotate %355 by %c128_i32_214 dim 1 : vector<2x256xf32>, i32 -> vector<2x256xf32>
    %c34 = arith.constant 34 : index
    %c0_215 = arith.constant 0 : index
    %c0_216 = arith.constant 0 : index
    %421 = vector.load %arg4[%c34, %c0_215, %c0_216] : memref<36x2x1xf32, #tpu.memory_space<vmem>>, vector<1x2x1xf32>
    %422 = vector.shape_cast %421 : vector<1x2x1xf32> to vector<2x1xf32>
    %c34_217 = arith.constant 34 : index
    %c0_218 = arith.constant 0 : index
    %c0_219 = arith.constant 0 : index
    %423 = vector.load %arg3[%c34_217, %c0_218, %c0_219] : memref<36x1x256xf32, #tpu.memory_space<vmem>>, vector<1x1x256xf32>
    %424 = vector.shape_cast %423 : vector<1x1x256xf32> to vector<1x256xf32>
    %425 = vector.broadcast %424 : vector<1x256xf32> to vector<2x256xf32>
    %426 = arith.mulf %425, %420 : vector<2x256xf32>
    %427 = vector.broadcast %422 : vector<2x1xf32> to vector<2x256xf32>
    %428 = arith.mulf %427, %426 : vector<2x256xf32>
    %429 = arith.addf %419, %428 : vector<2x256xf32>
    %c120_i32_220 = arith.constant 120 : i32
    %430 = tpu.dynamic_rotate %355 by %c120_i32_220 dim 1 : vector<2x256xf32>, i32 -> vector<2x256xf32>
    %c35 = arith.constant 35 : index
    %c0_221 = arith.constant 0 : index
    %c0_222 = arith.constant 0 : index
    %431 = vector.load %arg4[%c35, %c0_221, %c0_222] : memref<36x2x1xf32, #tpu.memory_space<vmem>>, vector<1x2x1xf32>
    %432 = vector.shape_cast %431 : vector<1x2x1xf32> to vector<2x1xf32>
    %c35_223 = arith.constant 35 : index
    %c0_224 = arith.constant 0 : index
    %c0_225 = arith.constant 0 : index
    %433 = vector.load %arg3[%c35_223, %c0_224, %c0_225] : memref<36x1x256xf32, #tpu.memory_space<vmem>>, vector<1x1x256xf32>
    %434 = vector.shape_cast %433 : vector<1x1x256xf32> to vector<1x256xf32>
    %435 = vector.broadcast %434 : vector<1x256xf32> to vector<2x256xf32>
    %436 = arith.mulf %435, %430 : vector<2x256xf32>
    %437 = vector.broadcast %432 : vector<2x1xf32> to vector<2x256xf32>
    %438 = arith.mulf %437, %436 : vector<2x256xf32>
    %439 = arith.addf %429, %438 : vector<2x256xf32>
    %440 = tpu.concatenate %112, %209, %318, %439 in 0 : vector<2x256xf32>, vector<2x256xf32>, vector<2x256xf32>, vector<2x256xf32> -> vector<8x256xf32>
    %cst_226 = arith.constant dense<0.000000e+00> : vector<8x256xf32>
    %441 = tpu.matmul %0, %440, %cst_226 {dimension_numbers = #tpu.dot_dimension_numbers<[1], [0], [0], [1], [0, 0, 1, 1], [], []>} : vector<8x8xf32>, vector<8x256xf32>, vector<8x256xf32> -> vector<8x256xf32>
    %442 = vector.broadcast %1 : vector<8x1xf32> to vector<8x256xf32>
    %443 = arith.addf %441, %442 : vector<8x256xf32>
    %cst_227 = arith.constant 5.000000e-01 : f32
    %444 = vector.broadcast %cst_227 : f32 to vector<8x256xf32>
    %445 = arith.mulf %444, %443 : vector<8x256xf32>
    %cst_228 = arith.constant 0.707106769 : f32
    %446 = vector.broadcast %cst_228 : f32 to vector<8x256xf32>
    %447 = arith.mulf %443, %446 : vector<8x256xf32>
    %cst_229 = arith.constant 0.000000e+00 : f32
    %448 = vector.broadcast %cst_229 : f32 to vector<8x256xf32>
    %449 = arith.cmpf oge, %447, %448 : vector<8x256xf32>
    %cst_230 = arith.constant 1.000000e+00 : f32
    %cst_231 = arith.constant -1.000000e+00 : f32
    %450 = vector.broadcast %cst_230 : f32 to vector<8x256xf32>
    %451 = vector.broadcast %cst_231 : f32 to vector<8x256xf32>
    %452 = arith.select %449, %450, %451 : vector<8x256xi1>, vector<8x256xf32>
    %453 = math.absf %447 : vector<8x256xf32>
    %cst_232 = arith.constant 0.327591091 : f32
    %454 = vector.broadcast %cst_232 : f32 to vector<8x256xf32>
    %455 = arith.mulf %454, %453 : vector<8x256xf32>
    %cst_233 = arith.constant 1.000000e+00 : f32
    %456 = vector.broadcast %cst_233 : f32 to vector<8x256xf32>
    %457 = arith.addf %456, %455 : vector<8x256xf32>
    %cst_234 = arith.constant 1.000000e+00 : f32
    %458 = vector.broadcast %cst_234 : f32 to vector<8x256xf32>
    %459 = arith.divf %458, %457 : vector<8x256xf32>
    %cst_235 = arith.constant 1.06140542 : f32
    %460 = vector.broadcast %cst_235 : f32 to vector<8x256xf32>
    %461 = arith.mulf %460, %459 : vector<8x256xf32>
    %cst_236 = arith.constant -1.45315206 : f32
    %462 = vector.broadcast %cst_236 : f32 to vector<8x256xf32>
    %463 = arith.addf %461, %462 : vector<8x256xf32>
    %464 = arith.mulf %463, %459 : vector<8x256xf32>
    %cst_237 = arith.constant 1.42141378 : f32
    %465 = vector.broadcast %cst_237 : f32 to vector<8x256xf32>
    %466 = arith.addf %464, %465 : vector<8x256xf32>
    %467 = arith.mulf %466, %459 : vector<8x256xf32>
    %cst_238 = arith.constant -0.284496725 : f32
    %468 = vector.broadcast %cst_238 : f32 to vector<8x256xf32>
    %469 = arith.addf %467, %468 : vector<8x256xf32>
    %470 = arith.mulf %469, %459 : vector<8x256xf32>
    %cst_239 = arith.constant 0.254829586 : f32
    %471 = vector.broadcast %cst_239 : f32 to vector<8x256xf32>
    %472 = arith.addf %470, %471 : vector<8x256xf32>
    %473 = arith.mulf %472, %459 : vector<8x256xf32>
    %cst_240 = arith.constant 0.000000e+00 : f32
    %474 = vector.broadcast %cst_240 : f32 to vector<8x256xf32>
    %475 = arith.subf %474, %453 : vector<8x256xf32>
    %476 = arith.mulf %475, %453 : vector<8x256xf32>
    %477 = math.exp %476 : vector<8x256xf32>
    %478 = arith.mulf %473, %477 : vector<8x256xf32>
    %cst_241 = arith.constant 1.000000e+00 : f32
    %479 = vector.broadcast %cst_241 : f32 to vector<8x256xf32>
    %480 = arith.subf %479, %478 : vector<8x256xf32>
    %481 = arith.mulf %452, %480 : vector<8x256xf32>
    %cst_242 = arith.constant 1.000000e+00 : f32
    %482 = vector.broadcast %cst_242 : f32 to vector<8x256xf32>
    %483 = arith.addf %482, %481 : vector<8x256xf32>
    %484 = arith.mulf %445, %483 : vector<8x256xf32>
    %485 = arith.mulf %484, %27 : vector<8x256xf32>
    %c0_243 = arith.constant 0 : index
    %c0_244 = arith.constant 0 : index
    %c0_245 = arith.constant 0 : index
    %c0_246 = arith.constant 0 : index
    %486 = vector.load %arg7[%c0_243, %c0_244, %c0_245, %c0_246] : memref<1x1x8x256xf32, #tpu.memory_space<vmem>>, vector<1x1x8x256xf32>
    %487 = vector.shape_cast %486 : vector<1x1x8x256xf32> to vector<8x256xf32>
    %488 = vector.shape_cast %485 : vector<8x256xf32> to vector<1x1x8x256xf32>
    tpu.vector_store %arg7[%c0_243, %c0_244, %c0_245, %c0_246], %488 {strides = array<i32>} : memref<1x1x8x256xf32, #tpu.memory_space<vmem>>, vector<1x1x8x256xf32>,
    return
  }
  func.func @transform_0(%arg0: i32) -> (i32, i32, i32, i32) {
    %c0_i32 = arith.constant 0 : i32
    %c0_i32_0 = arith.constant 0 : i32
    %c0_i32_1 = arith.constant 0 : i32
    %c0_i32_2 = arith.constant 0 : i32
    return %arg0, %c0_i32, %c0_i32_0, %c0_i32_1 : i32, i32, i32, i32
  }
  func.func @transform_1(%arg0: i32) -> (i32, i32, i32) {
    %c0_i32 = arith.constant 0 : i32
    %c0_i32_0 = arith.constant 0 : i32
    %c0_i32_1 = arith.constant 0 : i32
    %c0_i32_2 = arith.constant 0 : i32
    return %c0_i32, %c0_i32_0, %c0_i32_1 : i32, i32, i32
  }
  func.func @transform_2(%arg0: i32) -> (i32, i32, i32) {
    %c0_i32 = arith.constant 0 : i32
    %c0_i32_0 = arith.constant 0 : i32
    %c0_i32_1 = arith.constant 0 : i32
    %c0_i32_2 = arith.constant 0 : i32
    return %c0_i32, %c0_i32_0, %c0_i32_1 : i32, i32, i32
  }
  func.func @transform_3(%arg0: i32) -> (i32, i32, i32) {
    %c0_i32 = arith.constant 0 : i32
    %c0_i32_0 = arith.constant 0 : i32
    %c0_i32_1 = arith.constant 0 : i32
    %c0_i32_2 = arith.constant 0 : i32
    return %c0_i32, %c0_i32_0, %c0_i32_1 : i32, i32, i32
  }
  func.func @transform_4(%arg0: i32) -> (i32, i32) {
    %c0_i32 = arith.constant 0 : i32
    %c0_i32_0 = arith.constant 0 : i32
    %c0_i32_1 = arith.constant 0 : i32
    return %c0_i32, %c0_i32_0 : i32, i32
  }
  func.func @transform_5(%arg0: i32) -> (i32, i32) {
    %c0_i32 = arith.constant 0 : i32
    %c0_i32_0 = arith.constant 0 : i32
    %c0_i32_1 = arith.constant 0 : i32
    return %c0_i32, %c0_i32_0 : i32, i32
  }
  func.func @transform_6(%arg0: i32) -> (i32, i32, i32, i32) {
    %c0_i32 = arith.constant 0 : i32
    %c0_i32_0 = arith.constant 0 : i32
    %c0_i32_1 = arith.constant 0 : i32
    %c0_i32_2 = arith.constant 0 : i32
    return %arg0, %c0_i32, %c0_i32_0, %c0_i32_1 : i32, i32, i32, i32
  }
}

</mosaic_0001>

<llo_original>
// kernel: tpu_custom_call.1
$region0: #{tpu_custom_call.1}
  #allocation0 [shape = 'u32[]', space=smem, size = 0x4, offset = 0x4, fixed_abs, tag = 'smem constant byte address 0x4 - core index']
  #allocation1 [shape = 'u32[144,128]{1,0:T(1,128)}', space=vmem, size = 0x12000, scoped, tag = 'internal scratch']
  %s0 = inlined_call_operand.hbm [shape: f32[2,1,8,256], index: 0, kind: input, shape index: {}]
  %s1 = inlined_call_operand.vmem [shape: f32[6,1,256], index: 1, kind: input, shape index: {}]
  %s2 = inlined_call_operand.vmem [shape: f32[36,1,256], index: 2, kind: input, shape index: {}]
  %s3 = inlined_call_operand.vmem [shape: f32[36,2,1], index: 3, kind: input, shape index: {}]
  %s4 = inlined_call_operand.hbm [shape: f32[8,8], index: 4, kind: input, shape index: {}]
  %s5 = inlined_call_operand.vmem [shape: f32[8,1], index: 5, kind: input, shape index: {}]
  %s6 = inlined_call_operand.hbm [shape: f32[2,1,8,256], index: 6, kind: output, shape index: {}]
  %s7 = sld [smem:[#allocation0]]
  $region65: #{tpu_custom_call.1} parent=0
    _
  %s9 = ssub.s32 1, %s7
  %s10 = scalar_select 0, %s9, %s7
  $region1: #{tpu_custom_call.1} parent=0
    #allocation2 [shape = 'u8[16384]{0}', space=vmem, size = 0x4000, scoped, tag = 'input window, operand 0']
    #allocation3 [shape = 's32[2]{0}', space=sflag, size = 0x8, scoped, tag = 'scoped memory for tpu_custom_call.1']
    #allocation4 [shape = 's32[2]{0}', space=sflag, size = 0x8, scoped, tag = 'scoped memory for tpu_custom_call.1']
    #allocation5 [shape = 'u8[4096]{0}', space=vmem, size = 0x1000, scoped, tag = 'input window, operand 4, single buffered']
    #allocation6 [shape = 's32[1]{0}', space=sflag, size = 0x4, scoped, tag = 'scoped memory for tpu_custom_call.1']
    #allocation7 [shape = 'u8[16384]{0}', space=vmem, size = 0x4000, scoped, tag = 'output window, operand 0']
    %11 = vsyncpa [#allocation3], 0
    %s12 = scalar_lea.sflag [#allocation3], 1
    %13 = vsyncpa %s12, 0
    %14 = vsyncpa [#allocation6], 0
    %15 = vsyncpa [#allocation4], 0
    %s16 = scalar_lea.sflag [#allocation4], 1
    %17 = vsyncpa %s16, 0
    loop: start=0, step=1, limit=4
    $region2: #{tpu_custom_call.1} parent=1 // loop_pre_header
      _
    $region3: #{tpu_custom_call.1} parent=1 // loop_header
      %s19 = sphi 0, %s23
      %p20 = scmp.ge.s32.totalorder %s19, 4
      %s29 = sphi 0, %s31
      %s32 = sphi 0, %s29
      %s33 = sphi 0, %s32
      %s49 = sphi 0, %s33
      %s53 = sphi 0, %s53
      %s55 = sphi 0, %s53
      %s56 = sphi 0, %s55
      %s70 = sphi 0, %s56
      %s74 = sphi 0, %s74
      %s76 = sphi 0, %s74
      %s77 = sphi 0, %s76
      %s91 = sphi 0, %s77
      %s95 = sphi 0, %s95
      %s97 = sphi 0, %s95
      %s98 = sphi 0, %s97
      %s112 = sphi 0, %s98
      %s116 = sphi 0, %s116
      %s118 = sphi 0, %s116
      %s119 = sphi 0, %s118
      %s133 = sphi 0, %s119
      %s137 = sphi 0, %s137
      %s139 = sphi 0, %s137
      %s140 = sphi 0, %s139
      %s154 = sphi 0, %s140
      %s160 = sphi 0, %s162
      %s163 = sphi 0, %s160
      %s164 = sphi 0, %s163
      %s180 = sphi 0, %s164
    $region4: #{tpu_custom_call.1} parent=1 // loop_header_branch
      %22 = sbr.rel (%p20) target = $region8
    $region5: #{tpu_custom_call.1} parent=1 // loop_body
      %s24 = ssub.s32 %s19, 1
      %s25 = ssub.s32 %s19, 2
      %s26 = sadd.s32 %s19, 1
      %s27 = ssub.s32 %s19, %s26
      %p28 = scmp.eq.s32.totalorder %s27, 0
      %s30 = sadd.s32 %s29, 1
      %s31 = scalar_select %p28, %s29, %s30
      %p34 = pneg %p28
      %p35 = scmp.eq.s32.totalorder %s19, 1
      %p36 = por %p34, %p35
      %p37 = scmp.ne.s32.totalorder %s29, %s32
      %p38 = scmp.eq.s32.totalorder %s19, 0
      %p39 = por %p37, %p38
      %p40 = scmp.ne.s32.totalorder %s29, %s32
      %p41 = scmp.eq.s32.totalorder %s24, 1
      %p42 = por %p40, %p41
      %p43 = scmp.ne.s32.totalorder %s32, %s33
      %p44 = scmp.eq.s32.totalorder %s24, 0
      %p45 = por %p43, %p44
      %p46 = scmp.ne.s32.totalorder %s32, %s33
      %p47 = scmp.eq.s32.totalorder %s25, 1
      %p48 = por %p46, %p47
      %p50 = scmp.ne.s32.totalorder %s33, %s49
      %p51 = scmp.eq.s32.totalorder %s25, 0
      %p52 = por %p50, %p51
      %s54 = sadd.s32 %s53, 1
      %p57 = scmp.eq.s32.totalorder %s19, 1
      %p58 = scmp.ne.s32.totalorder %s53, %s55
      %p59 = scmp.eq.s32.totalorder %s19, 0
      %p60 = por %p58, %p59
      %p61 = scmp.ne.s32.totalorder %s53, %s55
      %p62 = scmp.eq.s32.totalorder %s24, 1
      %p63 = por %p61, %p62
      %p64 = scmp.ne.s32.totalorder %s55, %s56
      %p65 = scmp.eq.s32.totalorder %s24, 0
      %p66 = por %p64, %p65
      %p67 = scmp.ne.s32.totalorder %s55, %s56
      %p68 = scmp.eq.s32.totalorder %s25, 1
      %p69 = por %p67, %p68
      %p71 = scmp.ne.s32.totalorder %s56, %s70
      %p72 = scmp.eq.s32.totalorder %s25, 0
      %p73 = por %p71, %p72
      %s75 = sadd.s32 %s74, 1
      %p78 = scmp.eq.s32.totalorder %s19, 1
      %p79 = scmp.ne.s32.totalorder %s74, %s76
      %p80 = scmp.eq.s32.totalorder %s19, 0
      %p81 = por %p79, %p80
      %p82 = scmp.ne.s32.totalorder %s74, %s76
      %p83 = scmp.eq.s32.totalorder %s24, 1
      %p84 = por %p82, %p83
      %p85 = scmp.ne.s32.totalorder %s76, %s77
      %p86 = scmp.eq.s32.totalorder %s24, 0
      %p87 = por %p85, %p86
      %p88 = scmp.ne.s32.totalorder %s76, %s77
      %p89 = scmp.eq.s32.totalorder %s25, 1
      %p90 = por %p88, %p89
      %p92 = scmp.ne.s32.totalorder %s77, %s91
      %p93 = scmp.eq.s32.totalorder %s25, 0
      %p94 = por %p92, %p93
      %s96 = sadd.s32 %s95, 1
      %p99 = scmp.eq.s32.totalorder %s19, 1
      %p100 = scmp.ne.s32.totalorder %s95, %s97
      %p101 = scmp.eq.s32.totalorder %s19, 0
      %p102 = por %p100, %p101
      %p103 = scmp.ne.s32.totalorder %s95, %s97
      %p104 = scmp.eq.s32.totalorder %s24, 1
      %p105 = por %p103, %p104
      %p106 = scmp.ne.s32.totalorder %s97, %s98
      %p107 = scmp.eq.s32.totalorder %s24, 0
      %p108 = por %p106, %p107
      %p109 = scmp.ne.s32.totalorder %s97, %s98
      %p110 = scmp.eq.s32.totalorder %s25, 1
      %p111 = por %p109, %p110
      %p113 = scmp.ne.s32.totalorder %s98, %s112
      %p114 = scmp.eq.s32.totalorder %s25, 0
      %p115 = por %p113, %p114
      %s117 = sadd.s32 %s116, 1
      %p120 = scmp.eq.s32.totalorder %s19, 1
      %p121 = scmp.ne.s32.totalorder %s116, %s118
      %p122 = scmp.eq.s32.totalorder %s19, 0
      %p123 = por %p121, %p122
      %p124 = scmp.ne.s32.totalorder %s116, %s118
      %p125 = scmp.eq.s32.totalorder %s24, 1
      %p126 = por %p124, %p125
      %p127 = scmp.ne.s32.totalorder %s118, %s119
      %p128 = scmp.eq.s32.totalorder %s24, 0
      %p129 = por %p127, %p128
      %p130 = scmp.ne.s32.totalorder %s118, %s119
      %p131 = scmp.eq.s32.totalorder %s25, 1
      %p132 = por %p130, %p131
      %p134 = scmp.ne.s32.totalorder %s119, %s133
      %p135 = scmp.eq.s32.totalorder %s25, 0
      %p136 = por %p134, %p135
      %s138 = sadd.s32 %s137, 1
      %p141 = scmp.eq.s32.totalorder %s19, 1
      %p142 = scmp.ne.s32.totalorder %s137, %s139
      %p143 = scmp.eq.s32.totalorder %s19, 0
      %p144 = por %p142, %p143
      %p145 = scmp.ne.s32.totalorder %s137, %s139
      %p146 = scmp.eq.s32.totalorder %s24, 1
      %p147 = por %p145, %p146
      %p148 = scmp.ne.s32.totalorder %s139, %s140
      %p149 = scmp.eq.s32.totalorder %s24, 0
      %p150 = por %p148, %p149
      %p151 = scmp.ne.s32.totalorder %s139, %s140
      %p152 = scmp.eq.s32.totalorder %s25, 1
      %p153 = por %p151, %p152
      %p155 = scmp.ne.s32.totalorder %s140, %s154
      %p156 = scmp.eq.s32.totalorder %s25, 0
      %p157 = por %p155, %p156
      %s158 = ssub.s32 %s19, %s26
      %p159 = scmp.eq.s32.totalorder %s158, 0
      %s161 = sadd.s32 %s160, 1
      %s162 = scalar_select %p159, %s160, %s161
      %p165 = pneg %p159
      %p166 = scmp.eq.s32.totalorder %s19, 1
      %p167 = por %p165, %p166
      %p168 = scmp.ne.s32.totalorder %s160, %s163
      %p169 = scmp.eq.s32.totalorder %s19, 0
      %p170 = por %p168, %p169
      %p171 = scmp.ne.s32.totalorder %s160, %s163
      %p172 = scmp.eq.s32.totalorder %s24, 1
      %p173 = por %p171, %p172
      %p174 = scmp.ne.s32.totalorder %s163, %s164
      %p175 = scmp.eq.s32.totalorder %s24, 0
      %p176 = por %p174, %p175
      %p177 = scmp.ne.s32.totalorder %s163, %s164
      %p178 = scmp.eq.s32.totalorder %s25, 1
      %p179 = por %p177, %p178
      %p181 = scmp.ne.s32.totalorder %s164, %s180
      %p182 = scmp.eq.s32.totalorder %s25, 0
      %p183 = por %p181, %p182
      %p184 = scmp.le.s32.totalorder 1, %s19
      %p185 = scmp.lt.s32.totalorder %s19, 3
      %p186 = pnand %p184, %p185
      %p187 = pneg %p186
      // Predicated region
      $region9: #{tpu_custom_call.1} parent=5 // pred_check
        _
      $region10: #{tpu_custom_call.1} parent=5 // pred_check_branch
        %189 = sbr.rel (%p186) target = $region12
      $region11: #{tpu_custom_call.1} parent=5 // pred_region
        %s190 = ssub.s32 %s19, 1
        // Predicated region
        $region13: #{tpu_custom_call.1} parent=11 // pred_check
          %p191 = pneg %p66
        $region14: #{tpu_custom_call.1} parent=11 // pred_check_branch
          %193 = sbr.rel (%p191) target = $region16
        $region15: #{tpu_custom_call.1} parent=11 // pred_region
          _
        $region16: #{tpu_custom_call.1} parent=11 // pred_fallthru
          _
        // Predicated region
        $region17: #{tpu_custom_call.1} parent=11 // pred_check
          %p194 = pneg %p87
        $region18: #{tpu_custom_call.1} parent=11 // pred_check_branch
          %196 = sbr.rel (%p194) target = $region20
        $region19: #{tpu_custom_call.1} parent=11 // pred_region
          _
        $region20: #{tpu_custom_call.1} parent=11 // pred_fallthru
          _
        // Predicated region
        $region21: #{tpu_custom_call.1} parent=11 // pred_check
          %p197 = pneg %p108
        $region22: #{tpu_custom_call.1} parent=11 // pred_check_branch
          %199 = sbr.rel (%p197) target = $region24
        $region23: #{tpu_custom_call.1} parent=11 // pred_region
          _
        $region24: #{tpu_custom_call.1} parent=11 // pred_fallthru
          _
        // Predicated region
        $region25: #{tpu_custom_call.1} parent=11 // pred_check
          %p200 = pneg %p129
        $region26: #{tpu_custom_call.1} parent=11 // pred_check_branch
          %202 = sbr.rel (%p200) target = $region28
        $region27: #{tpu_custom_call.1} parent=11 // pred_region
          %s204 = ssub.s32 128, 128
          %205 = vsyncadd [#allocation6], %s204
          %s207 = sshll.u32 [#allocation5], 4
          %s208 = int_to_ptr.vmem [resolvable:$true] %s207
          %210 = dma.hbm_to_vmem [thread:$0]  %s4, 128, %s208, [#allocation6]
        $region28: #{tpu_custom_call.1} parent=11 // pred_fallthru
          _
        // Predicated region
        $region29: #{tpu_custom_call.1} parent=11 // pred_check
          %p211 = pneg %p150
        $region30: #{tpu_custom_call.1} parent=11 // pred_check_branch
          %213 = sbr.rel (%p211) target = $region32
        $region31: #{tpu_custom_call.1} parent=11 // pred_region
          _
        $region32: #{tpu_custom_call.1} parent=11 // pred_fallthru
          _
      $region12: #{tpu_custom_call.1} parent=5 // pred_fallthru
        _
      %p214 = scmp.lt.s32.totalorder %s19, 2
      // Predicated region
      $region33: #{tpu_custom_call.1} parent=5 // pred_check
        %p215 = pneg %p214
      $region34: #{tpu_custom_call.1} parent=5 // pred_check_branch
        %217 = sbr.rel (%p215) target = $region36
      $region35: #{tpu_custom_call.1} parent=5 // pred_region
        // Predicated region
        $region37: #{tpu_custom_call.1} parent=35 // pred_check
          %p218 = pneg %p39
        $region38: #{tpu_custom_call.1} parent=35 // pred_check_branch
          %220 = sbr.rel (%p218) target = $region40
        $region39: #{tpu_custom_call.1} parent=35 // pred_region
          %s221 = sand.u32 %s29, 1
          %s222 = scalar_lea.sflag [#allocation3], %s221
          %s223 = sand.u32 %s29, 1
          %s224 = smul.addr %s223, 16
          %s225 = scalar_lea.vmem [#allocation2], %s224
          %s227 = ssub.s32 256, 256
          %228 = vsyncadd %s222, %s227
          %s229 = smul.addr %s19, 2
          %s230 = smul.addr %s229, 128
          %s231 = scalar_lea.hbm %s0, %s230
          %s233 = sshll.u32 %s225, 4
          %s234 = int_to_ptr.vmem [resolvable:$true] %s233
          %236 = dma.hbm_to_vmem [thread:$0]  %s231, 256, %s234, %s222
        $region40: #{tpu_custom_call.1} parent=35 // pred_fallthru
          _
      $region36: #{tpu_custom_call.1} parent=5 // pred_fallthru
        _
      %p237 = scmp.le.s32.totalorder 1, %s19
      %p238 = scmp.lt.s32.totalorder %s19, 3
      %p239 = pnand %p237, %p238
      %p240 = pneg %p239
      // Predicated region
      $region41: #{tpu_custom_call.1} parent=5 // pred_check
        _
      $region42: #{tpu_custom_call.1} parent=5 // pred_check_branch
        %242 = sbr.rel (%p239) target = $region44
      $region43: #{tpu_custom_call.1} parent=5 // pred_region
        %s243 = ssub.s32 %s19, 1
        %s244 = sand.u32 %s32, 1
        %s245 = scalar_lea.sflag [#allocation3], %s244
        %s246 = sand.u32 %s32, 1
        %s247 = smul.addr %s246, 16
        %s248 = scalar_lea.vmem [#allocation2], %s247
        // Predicated region
        $region45: #{tpu_custom_call.1} parent=43 // pred_check
          %p249 = pneg %p45
        $region46: #{tpu_custom_call.1} parent=43 // pred_check_branch
          %251 = sbr.rel (%p249) target = $region48
        $region47: #{tpu_custom_call.1} parent=43 // pred_region
          %252 = dma.done %s245, 256
        $region48: #{tpu_custom_call.1} parent=43 // pred_fallthru
          _
        // Predicated region
        $region49: #{tpu_custom_call.1} parent=43 // pred_check
          %p253 = pneg %p129
        $region50: #{tpu_custom_call.1} parent=43 // pred_check_branch
          %255 = sbr.rel (%p253) target = $region52
        $region51: #{tpu_custom_call.1} parent=43 // pred_region
          %256 = dma.done [#allocation6], 128
        $region52: #{tpu_custom_call.1} parent=43 // pred_fallthru
          _
        %s257 = sand.u32 %s32, 1
        %s258 = scalar_lea.sflag [#allocation3], %s257
        %s259 = sand.u32 %s32, 1
        %s260 = smul.addr %s259, 16
        %s261 = scalar_lea.vmem [#allocation2], %s260
        %p262 = pneg %p45
        %p263 = pneg %p42
        %p264 = pneg %p66
        %p265 = pneg %p63
        %p266 = pneg %p87
        %p267 = pneg %p84
        %p268 = pneg %p108
        %p269 = pneg %p105
        %p270 = pneg %p129
        %p271 = pneg %p126
        %p272 = pneg %p150
        %p273 = pneg %p147
        %p274 = pneg %p176
        %p275 = pneg %p173
        %s276 = sand.u32 %s163, 1
        %s277 = scalar_lea.sflag [#allocation4], %s276
        %s278 = sand.u32 %s163, 1
        %s279 = smul.addr %s278, 16
        %s280 = scalar_lea.vmem [#allocation7], %s279
        %v281 = vld [vmem:[#allocation5] sm:$0xff]
        %v282 = vld [vmem:[%s5] sm:$0xff]
        %v283 = vld [vmem:[%s1] sm:$0x3]
        %vm284 = vcmp.gt.f32.partialorder %v283, 0.5
        %s285 = scalar_lea.vmem %s1, 2
        %v286 = vld [vmem:[%s285] sm:$0x3]
        %vm287 = vcmp.gt.f32.partialorder %v286, 0.5
        %s288 = scalar_lea.vmem %s1, 4
        %v289 = vld [vmem:[%s288] sm:$0x3]
        %vm290 = vcmp.gt.f32.partialorder %v289, 0.5
        %s291 = scalar_lea.vmem %s1, 6
        %v292 = vld [vmem:[%s291] sm:$0x3]
        %vm293 = vcmp.gt.f32.partialorder %v292, 0.5
        %s294 = scalar_lea.vmem %s1, 8
        %v295 = vld [vmem:[%s294] sm:$0x3]
        %vm296 = vcmp.gt.f32.partialorder %v295, 0.5
        %s297 = scalar_lea.vmem %s1, 10
        %v298 = vld [vmem:[%s297] sm:$0x3]
        %vm299 = vcmp.gt.f32.partialorder %v298, 0.5
        %v300 = vld [vmem:[%s248] sm:$0xff]
        %v301 = vld [vmem:[%s248 + $0x8] sm:$0xff]
        %s302 = scalar_lea.vmem %s3, 8
        %v303 = vld [vmem:[%s302] sm:$0x3]
        %305 = vset.pattern.permute.xlu0 0
        %306 = vperm.xlu0 %305, %v303
        %v307 = vpop.permute.xlu0 %306
        %v309 = vmul.f32 %v307, %v300
        %v310 = vmul.f32 %v307, %v301
        %311 = vrot.lane.b32.xlu0 %v300, 17
        %v312 = vpop.permute.xlu0 %311
        %313 = vrot.lane.b32.xlu0 %v301, 17
        %v314 = vpop.permute.xlu0 %313
        %v315 = vlaneseq
        %v316 = vand.u32 %v315, 127
        %vm317 = vcmp.lt.s32.totalorder %v316, 17
        %v318 = vsel %vm317, %v312, %v314
        %v319 = vsel %vm317, %v314, %v312
        %v320 = vld [vmem:[%s3] sm:$0x3]
        %v321 = vld [vmem:[%s2] sm:$0x3]
        %v323 = vlaneseq
        %v324 = vshrl.u32 %v323, 7
        %v325 = vsub.s32 0, %v324
        %v326 = vrot.slane %v321, %v325
        %v327 = vlaneseq
        %v328 = vshrl.u32 %v327, 7
        %v329 = vsub.s32 1, %v328
        %v330 = vrot.slane %v321, %v329
        %v333 = vmul.f32 %v326, %v319
        %v334 = vmul.f32 %v330, %v318
        %336 = vset.pattern.permute.xlu0 0
        %337 = vperm.xlu0 %336, %v320
        %v338 = vpop.permute.xlu0 %337
        %v340 = vmul.f32 %v338, %v333
        %v341 = vmul.f32 %v338, %v334
        %v342 = vadd.f32 %v309, %v340
        %v343 = vadd.f32 %v310, %v341
        %344 = vrot.lane.b32.xlu0 %v300, 16
        %v345 = vpop.permute.xlu0 %344
        %346 = vrot.lane.b32.xlu0 %v301, 16
        %v347 = vpop.permute.xlu0 %346
        %vm348 = vcmp.lt.s32.totalorder %v316, 16
        %v349 = vsel %vm348, %v345, %v347
        %v350 = vsel %vm348, %v347, %v345
        %s351 = scalar_lea.vmem %s3, 2
        %v352 = vld [vmem:[%s351] sm:$0x3]
        %s353 = scalar_lea.vmem %s2, 2
        %v354 = vld [vmem:[%s353] sm:$0x3]
        %v356 = vlaneseq
        %v357 = vshrl.u32 %v356, 7
        %v358 = vsub.s32 0, %v357
        %v359 = vrot.slane %v354, %v358
        %v360 = vlaneseq
        %v361 = vshrl.u32 %v360, 7
        %v362 = vsub.s32 1, %v361
        %v363 = vrot.slane %v354, %v362
        %v366 = vmul.f32 %v359, %v350
        %v367 = vmul.f32 %v363, %v349
        %369 = vset.pattern.permute.xlu0 0
        %370 = vperm.xlu0 %369, %v352
        %v371 = vpop.permute.xlu0 %370
        %v373 = vmul.f32 %v371, %v366
        %v374 = vmul.f32 %v371, %v367
        %v375 = vadd.f32 %v342, %v373
        %v376 = vadd.f32 %v343, %v374
        %377 = vrot.lane.b32.xlu0 %v300, 15
        %v378 = vpop.permute.xlu0 %377
        %379 = vrot.lane.b32.xlu0 %v301, 15
        %v380 = vpop.permute.xlu0 %379
        %vm381 = vcmp.lt.s32.totalorder %v316, 15
        %v382 = vsel %vm381, %v378, %v380
        %v383 = vsel %vm381, %v380, %v378
        %s384 = scalar_lea.vmem %s3, 4
        %v385 = vld [vmem:[%s384] sm:$0x3]
        %s386 = scalar_lea.vmem %s2, 4
        %v387 = vld [vmem:[%s386] sm:$0x3]
        %v389 = vlaneseq
        %v390 = vshrl.u32 %v389, 7
        %v391 = vsub.s32 0, %v390
        %v392 = vrot.slane %v387, %v391
        %v393 = vlaneseq
        %v394 = vshrl.u32 %v393, 7
        %v395 = vsub.s32 1, %v394
        %v396 = vrot.slane %v387, %v395
        %v399 = vmul.f32 %v392, %v383
        %v400 = vmul.f32 %v396, %v382
        %402 = vset.pattern.permute.xlu0 0
        %403 = vperm.xlu0 %402, %v385
        %v404 = vpop.permute.xlu0 %403
        %v406 = vmul.f32 %v404, %v399
        %v407 = vmul.f32 %v404, %v400
        %v408 = vadd.f32 %v375, %v406
        %v409 = vadd.f32 %v376, %v407
        %410 = vrot.lane.b32.xlu0 %v300, 1
        %v411 = vpop.permute.xlu0 %410
        %412 = vrot.lane.b32.xlu0 %v301, 1
        %v413 = vpop.permute.xlu0 %412
        %vm414 = vcmp.lt.s32.totalorder %v316, 1
        %v415 = vsel %vm414, %v411, %v413
        %v416 = vsel %vm414, %v413, %v411
        %s417 = scalar_lea.vmem %s3, 6
        %v418 = vld [vmem:[%s417] sm:$0x3]
        %s419 = scalar_lea.vmem %s2, 6
        %v420 = vld [vmem:[%s419] sm:$0x3]
        %v422 = vlaneseq
        %v423 = vshrl.u32 %v422, 7
        %v424 = vsub.s32 0, %v423
        %v425 = vrot.slane %v420, %v424
        %v426 = vlaneseq
        %v427 = vshrl.u32 %v426, 7
        %v428 = vsub.s32 1, %v427
        %v429 = vrot.slane %v420, %v428
        %v432 = vmul.f32 %v425, %v416
        %v433 = vmul.f32 %v429, %v415
        %435 = vset.pattern.permute.xlu0 0
        %436 = vperm.xlu0 %435, %v418
        %v437 = vpop.permute.xlu0 %436
        %v439 = vmul.f32 %v437, %v432
        %v440 = vmul.f32 %v437, %v433
        %v441 = vadd.f32 %v408, %v439
        %v442 = vadd.f32 %v409, %v440
        %443 = vrot.lane.b32.xlu0 %v300, 127
        %v444 = vpop.permute.xlu0 %443
        %445 = vrot.lane.b32.xlu0 %v301, 127
        %v446 = vpop.permute.xlu0 %445
        %vm447 = vcmp.lt.s32.totalorder %v316, 127
        %v448 = vsel %vm447, %v444, %v446
        %v449 = vsel %vm447, %v446, %v444
        %s450 = scalar_lea.vmem %s3, 10
        %v451 = vld [vmem:[%s450] sm:$0x3]
        %s452 = scalar_lea.vmem %s2, 10
        %v453 = vld [vmem:[%s452] sm:$0x3]
        %v455 = vlaneseq
        %v456 = vshrl.u32 %v455, 7
        %v457 = vsub.s32 0, %v456
        %v458 = vrot.slane %v453, %v457
        %v459 = vlaneseq
        %v460 = vshrl.u32 %v459, 7
        %v461 = vsub.s32 1, %v460
        %v462 = vrot.slane %v453, %v461
        %v465 = vmul.f32 %v458, %v448
        %v466 = vmul.f32 %v462, %v449
        %468 = vset.pattern.permute.xlu0 0
        %469 = vperm.xlu0 %468, %v451
        %v470 = vpop.permute.xlu0 %469
        %v472 = vmul.f32 %v470, %v465
        %v473 = vmul.f32 %v470, %v466
        %v474 = vadd.f32 %v441, %v472
        %v475 = vadd.f32 %v442, %v473
        %476 = vrot.lane.b32.xlu0 %v300, 113
        %v477 = vpop.permute.xlu0 %476
        %478 = vrot.lane.b32.xlu0 %v301, 113
        %v479 = vpop.permute.xlu0 %478
        %vm480 = vcmp.lt.s32.totalorder %v316, 113
        %v481 = vsel %vm480, %v477, %v479
        %v482 = vsel %vm480, %v479, %v477
        %s483 = scalar_lea.vmem %s3, 12
        %v484 = vld [vmem:[%s483] sm:$0x3]
        %s485 = scalar_lea.vmem %s2, 12
        %v486 = vld [vmem:[%s485] sm:$0x3]
        %v488 = vlaneseq
        %v489 = vshrl.u32 %v488, 7
        %v490 = vsub.s32 0, %v489
        %v491 = vrot.slane %v486, %v490
        %v492 = vlaneseq
        %v493 = vshrl.u32 %v492, 7
        %v494 = vsub.s32 1, %v493
        %v495 = vrot.slane %v486, %v494
        %v498 = vmul.f32 %v491, %v481
        %v499 = vmul.f32 %v495, %v482
        %501 = vset.pattern.permute.xlu0 0
        %502 = vperm.xlu0 %501, %v484
        %v503 = vpop.permute.xlu0 %502
        %v505 = vmul.f32 %v503, %v498
        %v506 = vmul.f32 %v503, %v499
        %v507 = vadd.f32 %v474, %v505
        %v508 = vadd.f32 %v475, %v506
        %509 = vrot.lane.b32.xlu0 %v300, 112
        %v510 = vpop.permute.xlu0 %509
        %511 = vrot.lane.b32.xlu0 %v301, 112
        %v512 = vpop.permute.xlu0 %511
        %vm513 = vcmp.lt.s32.totalorder %v316, 112
        %v514 = vsel %vm513, %v510, %v512
        %v515 = vsel %vm513, %v512, %v510
        %s516 = scalar_lea.vmem %s3, 14
        %v517 = vld [vmem:[%s516] sm:$0x3]
        %s518 = scalar_lea.vmem %s2, 14
        %v519 = vld [vmem:[%s518] sm:$0x3]
        %v521 = vlaneseq
        %v522 = vshrl.u32 %v521, 7
        %v523 = vsub.s32 0, %v522
        %v524 = vrot.slane %v519, %v523
        %v525 = vlaneseq
        %v526 = vshrl.u32 %v525, 7
        %v527 = vsub.s32 1, %v526
        %v528 = vrot.slane %v519, %v527
        %v531 = vmul.f32 %v524, %v514
        %v532 = vmul.f32 %v528, %v515
        %534 = vset.pattern.permute.xlu0 0
        %535 = vperm.xlu0 %534, %v517
        %v536 = vpop.permute.xlu0 %535
        %v538 = vmul.f32 %v536, %v531
        %v539 = vmul.f32 %v536, %v532
        %v540 = vadd.f32 %v507, %v538
        %v541 = vadd.f32 %v508, %v539
        %542 = vrot.lane.b32.xlu0 %v300, 111
        %v543 = vpop.permute.xlu0 %542
        %544 = vrot.lane.b32.xlu0 %v301, 111
        %v545 = vpop.permute.xlu0 %544
        %vm546 = vcmp.lt.s32.totalorder %v316, 111
        %v547 = vsel %vm546, %v543, %v545
        %v548 = vsel %vm546, %v545, %v543
        %s549 = scalar_lea.vmem %s3, 16
        %v550 = vld [vmem:[%s549] sm:$0x3]
        %s551 = scalar_lea.vmem %s2, 16
        %v552 = vld [vmem:[%s551] sm:$0x3]
        %v554 = vlaneseq
        %v555 = vshrl.u32 %v554, 7
        %v556 = vsub.s32 0, %v555
        %v557 = vrot.slane %v552, %v556
        %v558 = vlaneseq
        %v559 = vshrl.u32 %v558, 7
        %v560 = vsub.s32 1, %v559
        %v561 = vrot.slane %v552, %v560
        %v564 = vmul.f32 %v557, %v547
        %v565 = vmul.f32 %v561, %v548
        %567 = vset.pattern.permute.xlu0 0
        %568 = vperm.xlu0 %567, %v550
        %v569 = vpop.permute.xlu0 %568
        %v571 = vmul.f32 %v569, %v564
        %v572 = vmul.f32 %v569, %v565
        %v573 = vadd.f32 %v540, %v571
        %v574 = vadd.f32 %v541, %v572
        %v577 = vrot.slane %v300, 2
        %v578 = vrot.slane %v301, 2
        %581 = vrot.lane.b32.xlu0 %v577, 127
        %v582 = vpop.permute.xlu0 %581
        %583 = vrot.lane.b32.xlu0 %v578, 127
        %v584 = vpop.permute.xlu0 %583
        %v585 = vsel %vm447, %v582, %v584
        %v586 = vsel %vm447, %v584, %v582
        %587 = vrot.lane.b32.xlu0 %v577, 1
        %v588 = vpop.permute.xlu0 %587
        %589 = vrot.lane.b32.xlu0 %v578, 1
        %v590 = vpop.permute.xlu0 %589
        %v591 = vsel %vm414, %v588, %v590
        %v592 = vsel %vm414, %v590, %v588
        %v593 = vsel %vm284, 1, 0
        %v594 = vlaneseq
        %v595 = vshrl.u32 %v594, 7
        %v596 = vsub.s32 0, %v595
        %v597 = vrot.slane %v593, %v596
        %v598 = vlaneseq
        %v599 = vshrl.u32 %v598, 7
        %v600 = vsub.s32 1, %v599
        %v601 = vrot.slane %v593, %v600
        %vm602 = vcmp.eq.s32.totalorder %v597, 1
        %vm603 = vcmp.eq.s32.totalorder %v601, 1
        %v604 = vsel %vm602, %v585, %v592
        %v605 = vsel %vm603, %v586, %v591
        %v608 = vrot.slane %v604, 6
        %v609 = vrot.slane %v605, 6
        %v612 = vmax.f32 %v300, %v608
        %v613 = vmax.f32 %v301, %v609
        %v616 = vrot.slane %v612, 2
        %v617 = vrot.slane %v613, 2
        %620 = vrot.lane.b32.xlu0 %v616, 112
        %v621 = vpop.permute.xlu0 %620
        %622 = vrot.lane.b32.xlu0 %v617, 112
        %v623 = vpop.permute.xlu0 %622
        %v624 = vsel %vm513, %v621, %v623
        %v625 = vsel %vm513, %v623, %v621
        %626 = vrot.lane.b32.xlu0 %v616, 16
        %v627 = vpop.permute.xlu0 %626
        %628 = vrot.lane.b32.xlu0 %v617, 16
        %v629 = vpop.permute.xlu0 %628
        %v630 = vsel %vm348, %v627, %v629
        %v631 = vsel %vm348, %v629, %v627
        %v632 = vsel %vm287, 1, 0
        %v633 = vlaneseq
        %v634 = vshrl.u32 %v633, 7
        %v635 = vsub.s32 0, %v634
        %v636 = vrot.slane %v632, %v635
        %v637 = vlaneseq
        %v638 = vshrl.u32 %v637, 7
        %v639 = vsub.s32 1, %v638
        %v640 = vrot.slane %v632, %v639
        %vm641 = vcmp.eq.s32.totalorder %v636, 1
        %vm642 = vcmp.eq.s32.totalorder %v640, 1
        %v643 = vsel %vm641, %v624, %v631
        %v644 = vsel %vm642, %v625, %v630
        %v647 = vrot.slane %v643, 6
        %v648 = vrot.slane %v644, 6
        %v651 = vmax.f32 %v612, %v647
        %v652 = vmax.f32 %v613, %v648
        %s653 = scalar_lea.vmem %s3, 26
        %v654 = vld [vmem:[%s653] sm:$0x3]
        %656 = vset.pattern.permute.xlu0 0
        %657 = vperm.xlu0 %656, %v654
        %v658 = vpop.permute.xlu0 %657
        %v662 = vrot.slane %v651, 2
        %v663 = vrot.slane %v652, 2
        %v666 = vmul.f32 %v658, %v662
        %v667 = vmul.f32 %v658, %v663
        %668 = vrot.lane.b32.xlu0 %v662, 34
        %v669 = vpop.permute.xlu0 %668
        %670 = vrot.lane.b32.xlu0 %v663, 34
        %v671 = vpop.permute.xlu0 %670
        %vm672 = vcmp.lt.s32.totalorder %v316, 34
        %v673 = vsel %vm672, %v669, %v671
        %v674 = vsel %vm672, %v671, %v669
        %s675 = scalar_lea.vmem %s3, 18
        %v676 = vld [vmem:[%s675] sm:$0x3]
        %s677 = scalar_lea.vmem %s2, 18
        %v678 = vld [vmem:[%s677] sm:$0x3]
        %v680 = vlaneseq
        %v681 = vshrl.u32 %v680, 7
        %v682 = vsub.s32 0, %v681
        %v683 = vrot.slane %v678, %v682
        %v684 = vlaneseq
        %v685 = vshrl.u32 %v684, 7
        %v686 = vsub.s32 1, %v685
        %v687 = vrot.slane %v678, %v686
        %v690 = vmul.f32 %v683, %v674
        %v691 = vmul.f32 %v687, %v673
        %693 = vset.pattern.permute.xlu0 0
        %694 = vperm.xlu0 %693, %v676
        %v695 = vpop.permute.xlu0 %694
        %v697 = vmul.f32 %v695, %v690
        %v698 = vmul.f32 %v695, %v691
        %v699 = vadd.f32 %v666, %v697
        %v700 = vadd.f32 %v667, %v698
        %701 = vrot.lane.b32.xlu0 %v662, 32
        %v702 = vpop.permute.xlu0 %701
        %703 = vrot.lane.b32.xlu0 %v663, 32
        %v704 = vpop.permute.xlu0 %703
        %vm705 = vcmp.lt.s32.totalorder %v316, 32
        %v706 = vsel %vm705, %v702, %v704
        %v707 = vsel %vm705, %v704, %v702
        %s708 = scalar_lea.vmem %s3, 20
        %v709 = vld [vmem:[%s708] sm:$0x3]
        %s710 = scalar_lea.vmem %s2, 20
        %v711 = vld [vmem:[%s710] sm:$0x3]
        %v713 = vlaneseq
        %v714 = vshrl.u32 %v713, 7
        %v715 = vsub.s32 0, %v714
        %v716 = vrot.slane %v711, %v715
        %v717 = vlaneseq
        %v718 = vshrl.u32 %v717, 7
        %v719 = vsub.s32 1, %v718
        %v720 = vrot.slane %v711, %v719
        %v723 = vmul.f32 %v716, %v707
        %v724 = vmul.f32 %v720, %v706
        %726 = vset.pattern.permute.xlu0 0
        %727 = vperm.xlu0 %726, %v709
        %v728 = vpop.permute.xlu0 %727
        %v730 = vmul.f32 %v728, %v723
        %v731 = vmul.f32 %v728, %v724
        %v732 = vadd.f32 %v699, %v730
        %v733 = vadd.f32 %v700, %v731
        %734 = vrot.lane.b32.xlu0 %v662, 30
        %v735 = vpop.permute.xlu0 %734
        %736 = vrot.lane.b32.xlu0 %v663, 30
        %v737 = vpop.permute.xlu0 %736
        %vm738 = vcmp.lt.s32.totalorder %v316, 30
        %v739 = vsel %vm738, %v735, %v737
        %v740 = vsel %vm738, %v737, %v735
        %s741 = scalar_lea.vmem %s3, 22
        %v742 = vld [vmem:[%s741] sm:$0x3]
        %s743 = scalar_lea.vmem %s2, 22
        %v744 = vld [vmem:[%s743] sm:$0x3]
        %v746 = vlaneseq
        %v747 = vshrl.u32 %v746, 7
        %v748 = vsub.s32 0, %v747
        %v749 = vrot.slane %v744, %v748
        %v750 = vlaneseq
        %v751 = vshrl.u32 %v750, 7
        %v752 = vsub.s32 1, %v751
        %v753 = vrot.slane %v744, %v752
        %v756 = vmul.f32 %v749, %v740
        %v757 = vmul.f32 %v753, %v739
        %759 = vset.pattern.permute.xlu0 0
        %760 = vperm.xlu0 %759, %v742
        %v761 = vpop.permute.xlu0 %760
        %v763 = vmul.f32 %v761, %v756
        %v764 = vmul.f32 %v761, %v757
        %v765 = vadd.f32 %v732, %v763
        %v766 = vadd.f32 %v733, %v764
        %767 = vrot.lane.b32.xlu0 %v662, 2
        %v768 = vpop.permute.xlu0 %767
        %769 = vrot.lane.b32.xlu0 %v663, 2
        %v770 = vpop.permute.xlu0 %769
        %vm771 = vcmp.lt.s32.totalorder %v316, 2
        %v772 = vsel %vm771, %v768, %v770
        %v773 = vsel %vm771, %v770, %v768
        %s774 = scalar_lea.vmem %s3, 24
        %v775 = vld [vmem:[%s774] sm:$0x3]
        %s776 = scalar_lea.vmem %s2, 24
        %v777 = vld [vmem:[%s776] sm:$0x3]
        %v779 = vlaneseq
        %v780 = vshrl.u32 %v779, 7
        %v781 = vsub.s32 0, %v780
        %v782 = vrot.slane %v777, %v781
        %v783 = vlaneseq
        %v784 = vshrl.u32 %v783, 7
        %v785 = vsub.s32 1, %v784
        %v786 = vrot.slane %v777, %v785
        %v789 = vmul.f32 %v782, %v773
        %v790 = vmul.f32 %v786, %v772
        %792 = vset.pattern.permute.xlu0 0
        %793 = vperm.xlu0 %792, %v775
        %v794 = vpop.permute.xlu0 %793
        %v796 = vmul.f32 %v794, %v789
        %v797 = vmul.f32 %v794, %v790
        %v798 = vadd.f32 %v765, %v796
        %v799 = vadd.f32 %v766, %v797
        %800 = vrot.lane.b32.xlu0 %v662, 126
        %v801 = vpop.permute.xlu0 %800
        %802 = vrot.lane.b32.xlu0 %v663, 126
        %v803 = vpop.permute.xlu0 %802
        %vm804 = vcmp.lt.s32.totalorder %v316, 126
        %v805 = vsel %vm804, %v801, %v803
        %v806 = vsel %vm804, %v803, %v801
        %s807 = scalar_lea.vmem %s3, 28
        %v808 = vld [vmem:[%s807] sm:$0x3]
        %s809 = scalar_lea.vmem %s2, 28
        %v810 = vld [vmem:[%s809] sm:$0x3]
        %v812 = vlaneseq
        %v813 = vshrl.u32 %v812, 7
        %v814 = vsub.s32 0, %v813
        %v815 = vrot.slane %v810, %v814
        %v816 = vlaneseq
        %v817 = vshrl.u32 %v816, 7
        %v818 = vsub.s32 1, %v817
        %v819 = vrot.slane %v810, %v818
        %v822 = vmul.f32 %v815, %v805
        %v823 = vmul.f32 %v819, %v806
        %825 = vset.pattern.permute.xlu0 0
        %826 = vperm.xlu0 %825, %v808
        %v827 = vpop.permute.xlu0 %826
        %v829 = vmul.f32 %v827, %v822
        %v830 = vmul.f32 %v827, %v823
        %v831 = vadd.f32 %v798, %v829
        %v832 = vadd.f32 %v799, %v830
        %833 = vrot.lane.b32.xlu0 %v662, 98
        %v834 = vpop.permute.xlu0 %833
        %835 = vrot.lane.b32.xlu0 %v663, 98
        %v836 = vpop.permute.xlu0 %835
        %vm837 = vcmp.lt.s32.totalorder %v316, 98
        %v838 = vsel %vm837, %v834, %v836
        %v839 = vsel %vm837, %v836, %v834
        %s840 = scalar_lea.vmem %s3, 30
        %v841 = vld [vmem:[%s840] sm:$0x3]
        %s842 = scalar_lea.vmem %s2, 30
        %v843 = vld [vmem:[%s842] sm:$0x3]
        %v845 = vlaneseq
        %v846 = vshrl.u32 %v845, 7
        %v847 = vsub.s32 0, %v846
        %v848 = vrot.slane %v843, %v847
        %v849 = vlaneseq
        %v850 = vshrl.u32 %v849, 7
        %v851 = vsub.s32 1, %v850
        %v852 = vrot.slane %v843, %v851
        %v855 = vmul.f32 %v848, %v838
        %v856 = vmul.f32 %v852, %v839
        %858 = vset.pattern.permute.xlu0 0
        %859 = vperm.xlu0 %858, %v841
        %v860 = vpop.permute.xlu0 %859
        %v862 = vmul.f32 %v860, %v855
        %v863 = vmul.f32 %v860, %v856
        %v864 = vadd.f32 %v831, %v862
        %v865 = vadd.f32 %v832, %v863
        %866 = vrot.lane.b32.xlu0 %v662, 96
        %v867 = vpop.permute.xlu0 %866
        %868 = vrot.lane.b32.xlu0 %v663, 96
        %v869 = vpop.permute.xlu0 %868
        %vm870 = vcmp.lt.s32.totalorder %v316, 96
        %v871 = vsel %vm870, %v867, %v869
        %v872 = vsel %vm870, %v869, %v867
        %s873 = scalar_lea.vmem %s3, 32
        %v874 = vld [vmem:[%s873] sm:$0x3]
        %s875 = scalar_lea.vmem %s2, 32
        %v876 = vld [vmem:[%s875] sm:$0x3]
        %v878 = vlaneseq
        %v879 = vshrl.u32 %v878, 7
        %v880 = vsub.s32 0, %v879
        %v881 = vrot.slane %v876, %v880
        %v882 = vlaneseq
        %v883 = vshrl.u32 %v882, 7
        %v884 = vsub.s32 1, %v883
        %v885 = vrot.slane %v876, %v884
        %v888 = vmul.f32 %v881, %v871
        %v889 = vmul.f32 %v885, %v872
        %891 = vset.pattern.permute.xlu0 0
        %892 = vperm.xlu0 %891, %v874
        %v893 = vpop.permute.xlu0 %892
        %v895 = vmul.f32 %v893, %v888
        %v896 = vmul.f32 %v893, %v889
        %v897 = vadd.f32 %v864, %v895
        %v898 = vadd.f32 %v865, %v896
        %899 = vrot.lane.b32.xlu0 %v662, 94
        %v900 = vpop.permute.xlu0 %899
        %901 = vrot.lane.b32.xlu0 %v663, 94
        %v902 = vpop.permute.xlu0 %901
        %vm903 = vcmp.lt.s32.totalorder %v316, 94
        %v904 = vsel %vm903, %v900, %v902
        %v905 = vsel %vm903, %v902, %v900
        %s906 = scalar_lea.vmem %s3, 34
        %v907 = vld [vmem:[%s906] sm:$0x3]
        %s908 = scalar_lea.vmem %s2, 34
        %v909 = vld [vmem:[%s908] sm:$0x3]
        %v911 = vlaneseq
        %v912 = vshrl.u32 %v911, 7
        %v913 = vsub.s32 0, %v912
        %v914 = vrot.slane %v909, %v913
        %v915 = vlaneseq
        %v916 = vshrl.u32 %v915, 7
        %v917 = vsub.s32 1, %v916
        %v918 = vrot.slane %v909, %v917
        %v921 = vmul.f32 %v914, %v904
        %v922 = vmul.f32 %v918, %v905
        %924 = vset.pattern.permute.xlu0 0
        %925 = vperm.xlu0 %924, %v907
        %v926 = vpop.permute.xlu0 %925
        %v928 = vmul.f32 %v926, %v921
        %v929 = vmul.f32 %v926, %v922
        %v930 = vadd.f32 %v897, %v928
        %v931 = vadd.f32 %v898, %v929
        %v932 = vrot.slane %v300, 4
        %v933 = vrot.slane %v301, 4
        %936 = vrot.lane.b32.xlu0 %v932, 127
        %v937 = vpop.permute.xlu0 %936
        %938 = vrot.lane.b32.xlu0 %v933, 127
        %v939 = vpop.permute.xlu0 %938
        %v940 = vsel %vm447, %v937, %v939
        %v941 = vsel %vm447, %v939, %v937
        %942 = vrot.lane.b32.xlu0 %v932, 1
        %v943 = vpop.permute.xlu0 %942
        %944 = vrot.lane.b32.xlu0 %v933, 1
        %v945 = vpop.permute.xlu0 %944
        %v946 = vsel %vm414, %v943, %v945
        %v947 = vsel %vm414, %v945, %v943
        %v948 = vsel %vm602, %v940, %v947
        %v949 = vsel %vm603, %v941, %v946
        %v952 = vrot.slane %v948, 4
        %v953 = vrot.slane %v949, 4
        %v956 = vmax.f32 %v300, %v952
        %v957 = vmax.f32 %v301, %v953
        %v960 = vrot.slane %v956, 4
        %v961 = vrot.slane %v957, 4
        %964 = vrot.lane.b32.xlu0 %v960, 112
        %v965 = vpop.permute.xlu0 %964
        %966 = vrot.lane.b32.xlu0 %v961, 112
        %v967 = vpop.permute.xlu0 %966
        %v968 = vsel %vm513, %v965, %v967
        %v969 = vsel %vm513, %v967, %v965
        %970 = vrot.lane.b32.xlu0 %v960, 16
        %v971 = vpop.permute.xlu0 %970
        %972 = vrot.lane.b32.xlu0 %v961, 16
        %v973 = vpop.permute.xlu0 %972
        %v974 = vsel %vm348, %v971, %v973
        %v975 = vsel %vm348, %v973, %v971
        %v976 = vsel %vm641, %v968, %v975
        %v977 = vsel %vm642, %v969, %v974
        %v980 = vrot.slane %v976, 4
        %v981 = vrot.slane %v977, 4
        %v984 = vmax.f32 %v956, %v980
        %v985 = vmax.f32 %v957, %v981
        %v988 = vrot.slane %v984, 4
        %v989 = vrot.slane %v985, 4
        %992 = vrot.lane.b32.xlu0 %v988, 126
        %v993 = vpop.permute.xlu0 %992
        %994 = vrot.lane.b32.xlu0 %v989, 126
        %v995 = vpop.permute.xlu0 %994
        %v996 = vsel %vm804, %v993, %v995
        %v997 = vsel %vm804, %v995, %v993
        %998 = vrot.lane.b32.xlu0 %v988, 2
        %v999 = vpop.permute.xlu0 %998
        %1000 = vrot.lane.b32.xlu0 %v989, 2
        %v1001 = vpop.permute.xlu0 %1000
        %v1002 = vsel %vm771, %v999, %v1001
        %v1003 = vsel %vm771, %v1001, %v999
        %v1004 = vsel %vm290, 1, 0
        %v1005 = vlaneseq
        %v1006 = vshrl.u32 %v1005, 7
        %v1007 = vsub.s32 0, %v1006
        %v1008 = vrot.slane %v1004, %v1007
        %v1009 = vlaneseq
        %v1010 = vshrl.u32 %v1009, 7
        %v1011 = vsub.s32 1, %v1010
        %v1012 = vrot.slane %v1004, %v1011
        %vm1013 = vcmp.eq.s32.totalorder %v1008, 1
        %vm1014 = vcmp.eq.s32.totalorder %v1012, 1
        %v1015 = vsel %vm1013, %v996, %v1003
        %v1016 = vsel %vm1014, %v997, %v1002
        %v1019 = vrot.slane %v1015, 4
        %v1020 = vrot.slane %v1016, 4
        %v1023 = vmax.f32 %v984, %v1019
        %v1024 = vmax.f32 %v985, %v1020
        %v1027 = vrot.slane %v1023, 4
        %v1028 = vrot.slane %v1024, 4
        %1031 = vrot.lane.b32.xlu0 %v1027, 96
        %v1032 = vpop.permute.xlu0 %1031
        %1033 = vrot.lane.b32.xlu0 %v1028, 96
        %v1034 = vpop.permute.xlu0 %1033
        %v1035 = vsel %vm870, %v1032, %v1034
        %v1036 = vsel %vm870, %v1034, %v1032
        %1037 = vrot.lane.b32.xlu0 %v1027, 32
        %v1038 = vpop.permute.xlu0 %1037
        %1039 = vrot.lane.b32.xlu0 %v1028, 32
        %v1040 = vpop.permute.xlu0 %1039
        %v1041 = vsel %vm705, %v1038, %v1040
        %v1042 = vsel %vm705, %v1040, %v1038
        %v1043 = vsel %vm293, 1, 0
        %v1044 = vlaneseq
        %v1045 = vshrl.u32 %v1044, 7
        %v1046 = vsub.s32 0, %v1045
        %v1047 = vrot.slane %v1043, %v1046
        %v1048 = vlaneseq
        %v1049 = vshrl.u32 %v1048, 7
        %v1050 = vsub.s32 1, %v1049
        %v1051 = vrot.slane %v1043, %v1050
        %vm1052 = vcmp.eq.s32.totalorder %v1047, 1
        %vm1053 = vcmp.eq.s32.totalorder %v1051, 1
        %v1054 = vsel %vm1052, %v1035, %v1042
        %v1055 = vsel %vm1053, %v1036, %v1041
        %v1058 = vrot.slane %v1054, 4
        %v1059 = vrot.slane %v1055, 4
        %v1062 = vmax.f32 %v1023, %v1058
        %v1063 = vmax.f32 %v1024, %v1059
        %s1064 = scalar_lea.vmem %s3, 44
        %v1065 = vld [vmem:[%s1064] sm:$0x3]
        %1067 = vset.pattern.permute.xlu0 0
        %1068 = vperm.xlu0 %1067, %v1065
        %v1069 = vpop.permute.xlu0 %1068
        %v1073 = vrot.slane %v1062, 4
        %v1074 = vrot.slane %v1063, 4
        %v1077 = vmul.f32 %v1069, %v1073
        %v1078 = vmul.f32 %v1069, %v1074
        %1079 = vrot.lane.b32.xlu0 %v1073, 68
        %v1080 = vpop.permute.xlu0 %1079
        %1081 = vrot.lane.b32.xlu0 %v1074, 68
        %v1082 = vpop.permute.xlu0 %1081
        %vm1083 = vcmp.lt.s32.totalorder %v316, 68
        %v1084 = vsel %vm1083, %v1080, %v1082
        %v1085 = vsel %vm1083, %v1082, %v1080
        %s1086 = scalar_lea.vmem %s3, 36
        %v1087 = vld [vmem:[%s1086] sm:$0x3]
        %s1088 = scalar_lea.vmem %s2, 36
        %v1089 = vld [vmem:[%s1088] sm:$0x3]
        %v1091 = vlaneseq
        %v1092 = vshrl.u32 %v1091, 7
        %v1093 = vsub.s32 0, %v1092
        %v1094 = vrot.slane %v1089, %v1093
        %v1095 = vlaneseq
        %v1096 = vshrl.u32 %v1095, 7
        %v1097 = vsub.s32 1, %v1096
        %v1098 = vrot.slane %v1089, %v1097
        %v1101 = vmul.f32 %v1094, %v1085
        %v1102 = vmul.f32 %v1098, %v1084
        %1104 = vset.pattern.permute.xlu0 0
        %1105 = vperm.xlu0 %1104, %v1087
        %v1106 = vpop.permute.xlu0 %1105
        %v1108 = vmul.f32 %v1106, %v1101
        %v1109 = vmul.f32 %v1106, %v1102
        %v1110 = vadd.f32 %v1077, %v1108
        %v1111 = vadd.f32 %v1078, %v1109
        %1112 = vrot.lane.b32.xlu0 %v1073, 64
        %v1113 = vpop.permute.xlu0 %1112
        %1114 = vrot.lane.b32.xlu0 %v1074, 64
        %v1115 = vpop.permute.xlu0 %1114
        %vm1116 = vcmp.lt.s32.totalorder %v316, 64
        %v1117 = vsel %vm1116, %v1113, %v1115
        %v1118 = vsel %vm1116, %v1115, %v1113
        %s1119 = scalar_lea.vmem %s3, 38
        %v1120 = vld [vmem:[%s1119] sm:$0x3]
        %s1121 = scalar_lea.vmem %s2, 38
        %v1122 = vld [vmem:[%s1121] sm:$0x3]
        %v1124 = vlaneseq
        %v1125 = vshrl.u32 %v1124, 7
        %v1126 = vsub.s32 0, %v1125
        %v1127 = vrot.slane %v1122, %v1126
        %v1128 = vlaneseq
        %v1129 = vshrl.u32 %v1128, 7
        %v1130 = vsub.s32 1, %v1129
        %v1131 = vrot.slane %v1122, %v1130
        %v1134 = vmul.f32 %v1127, %v1118
        %v1135 = vmul.f32 %v1131, %v1117
        %1137 = vset.pattern.permute.xlu0 0
        %1138 = vperm.xlu0 %1137, %v1120
        %v1139 = vpop.permute.xlu0 %1138
        %v1141 = vmul.f32 %v1139, %v1134
        %v1142 = vmul.f32 %v1139, %v1135
        %v1143 = vadd.f32 %v1110, %v1141
        %v1144 = vadd.f32 %v1111, %v1142
        %1145 = vrot.lane.b32.xlu0 %v1073, 60
        %v1146 = vpop.permute.xlu0 %1145
        %1147 = vrot.lane.b32.xlu0 %v1074, 60
        %v1148 = vpop.permute.xlu0 %1147
        %vm1149 = vcmp.lt.s32.totalorder %v316, 60
        %v1150 = vsel %vm1149, %v1146, %v1148
        %v1151 = vsel %vm1149, %v1148, %v1146
        %s1152 = scalar_lea.vmem %s3, 40
        %v1153 = vld [vmem:[%s1152] sm:$0x3]
        %s1154 = scalar_lea.vmem %s2, 40
        %v1155 = vld [vmem:[%s1154] sm:$0x3]
        %v1157 = vlaneseq
        %v1158 = vshrl.u32 %v1157, 7
        %v1159 = vsub.s32 0, %v1158
        %v1160 = vrot.slane %v1155, %v1159
        %v1161 = vlaneseq
        %v1162 = vshrl.u32 %v1161, 7
        %v1163 = vsub.s32 1, %v1162
        %v1164 = vrot.slane %v1155, %v1163
        %v1167 = vmul.f32 %v1160, %v1151
        %v1168 = vmul.f32 %v1164, %v1150
        %1170 = vset.pattern.permute.xlu0 0
        %1171 = vperm.xlu0 %1170, %v1153
        %v1172 = vpop.permute.xlu0 %1171
        %v1174 = vmul.f32 %v1172, %v1167
        %v1175 = vmul.f32 %v1172, %v1168
        %v1176 = vadd.f32 %v1143, %v1174
        %v1177 = vadd.f32 %v1144, %v1175
        %1178 = vrot.lane.b32.xlu0 %v1073, 4
        %v1179 = vpop.permute.xlu0 %1178
        %1180 = vrot.lane.b32.xlu0 %v1074, 4
        %v1181 = vpop.permute.xlu0 %1180
        %vm1182 = vcmp.lt.s32.totalorder %v316, 4
        %v1183 = vsel %vm1182, %v1179, %v1181
        %v1184 = vsel %vm1182, %v1181, %v1179
        %s1185 = scalar_lea.vmem %s3, 42
        %v1186 = vld [vmem:[%s1185] sm:$0x3]
        %s1187 = scalar_lea.vmem %s2, 42
        %v1188 = vld [vmem:[%s1187] sm:$0x3]
        %v1190 = vlaneseq
        %v1191 = vshrl.u32 %v1190, 7
        %v1192 = vsub.s32 0, %v1191
        %v1193 = vrot.slane %v1188, %v1192
        %v1194 = vlaneseq
        %v1195 = vshrl.u32 %v1194, 7
        %v1196 = vsub.s32 1, %v1195
        %v1197 = vrot.slane %v1188, %v1196
        %v1200 = vmul.f32 %v1193, %v1184
        %v1201 = vmul.f32 %v1197, %v1183
        %1203 = vset.pattern.permute.xlu0 0
        %1204 = vperm.xlu0 %1203, %v1186
        %v1205 = vpop.permute.xlu0 %1204
        %v1207 = vmul.f32 %v1205, %v1200
        %v1208 = vmul.f32 %v1205, %v1201
        %v1209 = vadd.f32 %v1176, %v1207
        %v1210 = vadd.f32 %v1177, %v1208
        %1211 = vrot.lane.b32.xlu0 %v1073, 124
        %v1212 = vpop.permute.xlu0 %1211
        %1213 = vrot.lane.b32.xlu0 %v1074, 124
        %v1214 = vpop.permute.xlu0 %1213
        %vm1215 = vcmp.lt.s32.totalorder %v316, 124
        %v1216 = vsel %vm1215, %v1212, %v1214
        %v1217 = vsel %vm1215, %v1214, %v1212
        %s1218 = scalar_lea.vmem %s3, 46
        %v1219 = vld [vmem:[%s1218] sm:$0x3]
        %s1220 = scalar_lea.vmem %s2, 46
        %v1221 = vld [vmem:[%s1220] sm:$0x3]
        %v1223 = vlaneseq
        %v1224 = vshrl.u32 %v1223, 7
        %v1225 = vsub.s32 0, %v1224
        %v1226 = vrot.slane %v1221, %v1225
        %v1227 = vlaneseq
        %v1228 = vshrl.u32 %v1227, 7
        %v1229 = vsub.s32 1, %v1228
        %v1230 = vrot.slane %v1221, %v1229
        %v1233 = vmul.f32 %v1226, %v1216
        %v1234 = vmul.f32 %v1230, %v1217
        %1236 = vset.pattern.permute.xlu0 0
        %1237 = vperm.xlu0 %1236, %v1219
        %v1238 = vpop.permute.xlu0 %1237
        %v1240 = vmul.f32 %v1238, %v1233
        %v1241 = vmul.f32 %v1238, %v1234
        %v1242 = vadd.f32 %v1209, %v1240
        %v1243 = vadd.f32 %v1210, %v1241
        %s1244 = scalar_lea.vmem %s3, 48
        %v1245 = vld [vmem:[%s1244] sm:$0x3]
        %s1246 = scalar_lea.vmem %s2, 48
        %v1247 = vld [vmem:[%s1246] sm:$0x3]
        %v1249 = vlaneseq
        %v1250 = vshrl.u32 %v1249, 7
        %v1251 = vsub.s32 0, %v1250
        %v1252 = vrot.slane %v1247, %v1251
        %v1253 = vlaneseq
        %v1254 = vshrl.u32 %v1253, 7
        %v1255 = vsub.s32 1, %v1254
        %v1256 = vrot.slane %v1247, %v1255
        %v1259 = vmul.f32 %v1252, %v1084
        %v1260 = vmul.f32 %v1256, %v1085
        %1262 = vset.pattern.permute.xlu0 0
        %1263 = vperm.xlu0 %1262, %v1245
        %v1264 = vpop.permute.xlu0 %1263
        %v1266 = vmul.f32 %v1264, %v1259
        %v1267 = vmul.f32 %v1264, %v1260
        %v1268 = vadd.f32 %v1242, %v1266
        %v1269 = vadd.f32 %v1243, %v1267
        %s1270 = scalar_lea.vmem %s3, 50
        %v1271 = vld [vmem:[%s1270] sm:$0x3]
        %s1272 = scalar_lea.vmem %s2, 50
        %v1273 = vld [vmem:[%s1272] sm:$0x3]
        %v1275 = vlaneseq
        %v1276 = vshrl.u32 %v1275, 7
        %v1277 = vsub.s32 0, %v1276
        %v1278 = vrot.slane %v1273, %v1277
        %v1279 = vlaneseq
        %v1280 = vshrl.u32 %v1279, 7
        %v1281 = vsub.s32 1, %v1280
        %v1282 = vrot.slane %v1273, %v1281
        %v1285 = vmul.f32 %v1278, %v1117
        %v1286 = vmul.f32 %v1282, %v1118
        %1288 = vset.pattern.permute.xlu0 0
        %1289 = vperm.xlu0 %1288, %v1271
        %v1290 = vpop.permute.xlu0 %1289
        %v1292 = vmul.f32 %v1290, %v1285
        %v1293 = vmul.f32 %v1290, %v1286
        %v1294 = vadd.f32 %v1268, %v1292
        %v1295 = vadd.f32 %v1269, %v1293
        %s1296 = scalar_lea.vmem %s3, 52
        %v1297 = vld [vmem:[%s1296] sm:$0x3]
        %s1298 = scalar_lea.vmem %s2, 52
        %v1299 = vld [vmem:[%s1298] sm:$0x3]
        %v1301 = vlaneseq
        %v1302 = vshrl.u32 %v1301, 7
        %v1303 = vsub.s32 0, %v1302
        %v1304 = vrot.slane %v1299, %v1303
        %v1305 = vlaneseq
        %v1306 = vshrl.u32 %v1305, 7
        %v1307 = vsub.s32 1, %v1306
        %v1308 = vrot.slane %v1299, %v1307
        %v1311 = vmul.f32 %v1304, %v1150
        %v1312 = vmul.f32 %v1308, %v1151
        %1314 = vset.pattern.permute.xlu0 0
        %1315 = vperm.xlu0 %1314, %v1297
        %v1316 = vpop.permute.xlu0 %1315
        %v1318 = vmul.f32 %v1316, %v1311
        %v1319 = vmul.f32 %v1316, %v1312
        %v1320 = vadd.f32 %v1294, %v1318
        %v1321 = vadd.f32 %v1295, %v1319
        %v1322 = vrot.slane %v300, 6
        %v1323 = vrot.slane %v301, 6
        %1326 = vrot.lane.b32.xlu0 %v1322, 127
        %v1327 = vpop.permute.xlu0 %1326
        %1328 = vrot.lane.b32.xlu0 %v1323, 127
        %v1329 = vpop.permute.xlu0 %1328
        %v1330 = vsel %vm447, %v1327, %v1329
        %v1331 = vsel %vm447, %v1329, %v1327
        %1332 = vrot.lane.b32.xlu0 %v1322, 1
        %v1333 = vpop.permute.xlu0 %1332
        %1334 = vrot.lane.b32.xlu0 %v1323, 1
        %v1335 = vpop.permute.xlu0 %1334
        %v1336 = vsel %vm414, %v1333, %v1335
        %v1337 = vsel %vm414, %v1335, %v1333
        %v1338 = vsel %vm602, %v1330, %v1337
        %v1339 = vsel %vm603, %v1331, %v1336
        %v1342 = vrot.slane %v1338, 2
        %v1343 = vrot.slane %v1339, 2
        %v1346 = vmax.f32 %v300, %v1342
        %v1347 = vmax.f32 %v301, %v1343
        %v1350 = vrot.slane %v1346, 6
        %v1351 = vrot.slane %v1347, 6
        %1354 = vrot.lane.b32.xlu0 %v1350, 112
        %v1355 = vpop.permute.xlu0 %1354
        %1356 = vrot.lane.b32.xlu0 %v1351, 112
        %v1357 = vpop.permute.xlu0 %1356
        %v1358 = vsel %vm513, %v1355, %v1357
        %v1359 = vsel %vm513, %v1357, %v1355
        %1360 = vrot.lane.b32.xlu0 %v1350, 16
        %v1361 = vpop.permute.xlu0 %1360
        %1362 = vrot.lane.b32.xlu0 %v1351, 16
        %v1363 = vpop.permute.xlu0 %1362
        %v1364 = vsel %vm348, %v1361, %v1363
        %v1365 = vsel %vm348, %v1363, %v1361
        %v1366 = vsel %vm641, %v1358, %v1365
        %v1367 = vsel %vm642, %v1359, %v1364
        %v1370 = vrot.slane %v1366, 2
        %v1371 = vrot.slane %v1367, 2
        %v1374 = vmax.f32 %v1346, %v1370
        %v1375 = vmax.f32 %v1347, %v1371
        %v1378 = vrot.slane %v1374, 6
        %v1379 = vrot.slane %v1375, 6
        %1382 = vrot.lane.b32.xlu0 %v1378, 126
        %v1383 = vpop.permute.xlu0 %1382
        %1384 = vrot.lane.b32.xlu0 %v1379, 126
        %v1385 = vpop.permute.xlu0 %1384
        %v1386 = vsel %vm804, %v1383, %v1385
        %v1387 = vsel %vm804, %v1385, %v1383
        %1388 = vrot.lane.b32.xlu0 %v1378, 2
        %v1389 = vpop.permute.xlu0 %1388
        %1390 = vrot.lane.b32.xlu0 %v1379, 2
        %v1391 = vpop.permute.xlu0 %1390
        %v1392 = vsel %vm771, %v1389, %v1391
        %v1393 = vsel %vm771, %v1391, %v1389
        %v1394 = vsel %vm1013, %v1386, %v1393
        %v1395 = vsel %vm1014, %v1387, %v1392
        %v1398 = vrot.slane %v1394, 2
        %v1399 = vrot.slane %v1395, 2
        %v1402 = vmax.f32 %v1374, %v1398
        %v1403 = vmax.f32 %v1375, %v1399
        %v1406 = vrot.slane %v1402, 6
        %v1407 = vrot.slane %v1403, 6
        %1410 = vrot.lane.b32.xlu0 %v1406, 96
        %v1411 = vpop.permute.xlu0 %1410
        %1412 = vrot.lane.b32.xlu0 %v1407, 96
        %v1413 = vpop.permute.xlu0 %1412
        %v1414 = vsel %vm870, %v1411, %v1413
        %v1415 = vsel %vm870, %v1413, %v1411
        %1416 = vrot.lane.b32.xlu0 %v1406, 32
        %v1417 = vpop.permute.xlu0 %1416
        %1418 = vrot.lane.b32.xlu0 %v1407, 32
        %v1419 = vpop.permute.xlu0 %1418
        %v1420 = vsel %vm705, %v1417, %v1419
        %v1421 = vsel %vm705, %v1419, %v1417
        %v1422 = vsel %vm1052, %v1414, %v1421
        %v1423 = vsel %vm1053, %v1415, %v1420
        %v1426 = vrot.slane %v1422, 2
        %v1427 = vrot.slane %v1423, 2
        %v1430 = vmax.f32 %v1402, %v1426
        %v1431 = vmax.f32 %v1403, %v1427
        %v1434 = vrot.slane %v1430, 6
        %v1435 = vrot.slane %v1431, 6
        %1438 = vrot.lane.b32.xlu0 %v1434, 124
        %v1439 = vpop.permute.xlu0 %1438
        %1440 = vrot.lane.b32.xlu0 %v1435, 124
        %v1441 = vpop.permute.xlu0 %1440
        %v1442 = vsel %vm1215, %v1439, %v1441
        %v1443 = vsel %vm1215, %v1441, %v1439
        %1444 = vrot.lane.b32.xlu0 %v1434, 4
        %v1445 = vpop.permute.xlu0 %1444
        %1446 = vrot.lane.b32.xlu0 %v1435, 4
        %v1447 = vpop.permute.xlu0 %1446
        %v1448 = vsel %vm1182, %v1445, %v1447
        %v1449 = vsel %vm1182, %v1447, %v1445
        %v1450 = vsel %vm296, 1, 0
        %v1451 = vlaneseq
        %v1452 = vshrl.u32 %v1451, 7
        %v1453 = vsub.s32 0, %v1452
        %v1454 = vrot.slane %v1450, %v1453
        %v1455 = vlaneseq
        %v1456 = vshrl.u32 %v1455, 7
        %v1457 = vsub.s32 1, %v1456
        %v1458 = vrot.slane %v1450, %v1457
        %vm1459 = vcmp.eq.s32.totalorder %v1454, 1
        %vm1460 = vcmp.eq.s32.totalorder %v1458, 1
        %v1461 = vsel %vm1459, %v1442, %v1449
        %v1462 = vsel %vm1460, %v1443, %v1448
        %v1465 = vrot.slane %v1461, 2
        %v1466 = vrot.slane %v1462, 2
        %v1469 = vmax.f32 %v1430, %v1465
        %v1470 = vmax.f32 %v1431, %v1466
        %v1473 = vrot.slane %v1469, 6
        %v1474 = vrot.slane %v1470, 6
        %1477 = vrot.lane.b32.xlu0 %v1473, 64
        %v1478 = vpop.permute.xlu0 %1477
        %1479 = vrot.lane.b32.xlu0 %v1474, 64
        %v1480 = vpop.permute.xlu0 %1479
        %v1481 = vsel %vm1116, %v1478, %v1480
        %v1482 = vsel %vm1116, %v1480, %v1478
        %v1483 = vsel %vm299, 1, 0
        %v1484 = vlaneseq
        %v1485 = vshrl.u32 %v1484, 7
        %v1486 = vsub.s32 0, %v1485
        %v1487 = vrot.slane %v1483, %v1486
        %v1488 = vlaneseq
        %v1489 = vshrl.u32 %v1488, 7
        %v1490 = vsub.s32 1, %v1489
        %v1491 = vrot.slane %v1483, %v1490
        %vm1492 = vcmp.eq.s32.totalorder %v1487, 1
        %vm1493 = vcmp.eq.s32.totalorder %v1491, 1
        %v1494 = vsel %vm1492, %v1481, %v1482
        %v1495 = vsel %vm1493, %v1482, %v1481
        %v1498 = vrot.slane %v1494, 2
        %v1499 = vrot.slane %v1495, 2
        %v1502 = vmax.f32 %v1469, %v1498
        %v1503 = vmax.f32 %v1470, %v1499
        %s1504 = scalar_lea.vmem %s3, 62
        %v1505 = vld [vmem:[%s1504] sm:$0x3]
        %1507 = vset.pattern.permute.xlu0 0
        %1508 = vperm.xlu0 %1507, %v1505
        %v1509 = vpop.permute.xlu0 %1508
        %v1513 = vrot.slane %v1502, 6
        %v1514 = vrot.slane %v1503, 6
        %v1517 = vmul.f32 %v1509, %v1513
        %v1518 = vmul.f32 %v1509, %v1514
        %1519 = vrot.lane.b32.xlu0 %v1513, 8
        %v1520 = vpop.permute.xlu0 %1519
        %1521 = vrot.lane.b32.xlu0 %v1514, 8
        %v1522 = vpop.permute.xlu0 %1521
        %vm1523 = vcmp.lt.s32.totalorder %v316, 8
        %v1524 = vsel %vm1523, %v1520, %v1522
        %v1525 = vsel %vm1523, %v1522, %v1520
        %s1526 = scalar_lea.vmem %s3, 54
        %v1527 = vld [vmem:[%s1526] sm:$0x3]
        %s1528 = scalar_lea.vmem %s2, 54
        %v1529 = vld [vmem:[%s1528] sm:$0x3]
        %v1531 = vlaneseq
        %v1532 = vshrl.u32 %v1531, 7
        %v1533 = vsub.s32 0, %v1532
        %v1534 = vrot.slane %v1529, %v1533
        %v1535 = vlaneseq
        %v1536 = vshrl.u32 %v1535, 7
        %v1537 = vsub.s32 1, %v1536
        %v1538 = vrot.slane %v1529, %v1537
        %v1541 = vmul.f32 %v1534, %v1524
        %v1542 = vmul.f32 %v1538, %v1525
        %1544 = vset.pattern.permute.xlu0 0
        %1545 = vperm.xlu0 %1544, %v1527
        %v1546 = vpop.permute.xlu0 %1545
        %v1548 = vmul.f32 %v1546, %v1541
        %v1549 = vmul.f32 %v1546, %v1542
        %v1550 = vadd.f32 %v1517, %v1548
        %v1551 = vadd.f32 %v1518, %v1549
        %s1552 = scalar_lea.vmem %s3, 56
        %v1553 = vld [vmem:[%s1552] sm:$0x3]
        %s1554 = scalar_lea.vmem %s2, 56
        %v1555 = vld [vmem:[%s1554] sm:$0x3]
        %v1557 = vlaneseq
        %v1558 = vshrl.u32 %v1557, 7
        %v1559 = vsub.s32 0, %v1558
        %v1560 = vrot.slane %v1555, %v1559
        %v1561 = vlaneseq
        %v1562 = vshrl.u32 %v1561, 7
        %v1563 = vsub.s32 1, %v1562
        %v1564 = vrot.slane %v1555, %v1563
        %v1567 = vmul.f32 %v1560, %v1514
        %v1568 = vmul.f32 %v1564, %v1513
        %1570 = vset.pattern.permute.xlu0 0
        %1571 = vperm.xlu0 %1570, %v1553
        %v1572 = vpop.permute.xlu0 %1571
        %v1574 = vmul.f32 %v1572, %v1567
        %v1575 = vmul.f32 %v1572, %v1568
        %v1576 = vadd.f32 %v1550, %v1574
        %v1577 = vadd.f32 %v1551, %v1575
        %1578 = vrot.lane.b32.xlu0 %v1513, 120
        %v1579 = vpop.permute.xlu0 %1578
        %1580 = vrot.lane.b32.xlu0 %v1514, 120
        %v1581 = vpop.permute.xlu0 %1580
        %vm1582 = vcmp.lt.s32.totalorder %v316, 120
        %v1583 = vsel %vm1582, %v1579, %v1581
        %v1584 = vsel %vm1582, %v1581, %v1579
        %s1585 = scalar_lea.vmem %s3, 58
        %v1586 = vld [vmem:[%s1585] sm:$0x3]
        %s1587 = scalar_lea.vmem %s2, 58
        %v1588 = vld [vmem:[%s1587] sm:$0x3]
        %v1590 = vlaneseq
        %v1591 = vshrl.u32 %v1590, 7
        %v1592 = vsub.s32 0, %v1591
        %v1593 = vrot.slane %v1588, %v1592
        %v1594 = vlaneseq
        %v1595 = vshrl.u32 %v1594, 7
        %v1596 = vsub.s32 1, %v1595
        %v1597 = vrot.slane %v1588, %v1596
        %v1600 = vmul.f32 %v1593, %v1584
        %v1601 = vmul.f32 %v1597, %v1583
        %1603 = vset.pattern.permute.xlu0 0
        %1604 = vperm.xlu0 %1603, %v1586
        %v1605 = vpop.permute.xlu0 %1604
        %v1607 = vmul.f32 %v1605, %v1600
        %v1608 = vmul.f32 %v1605, %v1601
        %v1609 = vadd.f32 %v1576, %v1607
        %v1610 = vadd.f32 %v1577, %v1608
        %s1611 = scalar_lea.vmem %s3, 60
        %v1612 = vld [vmem:[%s1611] sm:$0x3]
        %s1613 = scalar_lea.vmem %s2, 60
        %v1614 = vld [vmem:[%s1613] sm:$0x3]
        %v1616 = vlaneseq
        %v1617 = vshrl.u32 %v1616, 7
        %v1618 = vsub.s32 0, %v1617
        %v1619 = vrot.slane %v1614, %v1618
        %v1620 = vlaneseq
        %v1621 = vshrl.u32 %v1620, 7
        %v1622 = vsub.s32 1, %v1621
        %v1623 = vrot.slane %v1614, %v1622
        %v1626 = vmul.f32 %v1619, %v1525
        %v1627 = vmul.f32 %v1623, %v1524
        %1629 = vset.pattern.permute.xlu0 0
        %1630 = vperm.xlu0 %1629, %v1612
        %v1631 = vpop.permute.xlu0 %1630
        %v1633 = vmul.f32 %v1631, %v1626
        %v1634 = vmul.f32 %v1631, %v1627
        %v1635 = vadd.f32 %v1609, %v1633
        %v1636 = vadd.f32 %v1610, %v1634
        %s1637 = scalar_lea.vmem %s3, 64
        %v1638 = vld [vmem:[%s1637] sm:$0x3]
        %s1639 = scalar_lea.vmem %s2, 64
        %v1640 = vld [vmem:[%s1639] sm:$0x3]
        %v1642 = vlaneseq
        %v1643 = vshrl.u32 %v1642, 7
        %v1644 = vsub.s32 0, %v1643
        %v1645 = vrot.slane %v1640, %v1644
        %v1646 = vlaneseq
        %v1647 = vshrl.u32 %v1646, 7
        %v1648 = vsub.s32 1, %v1647
        %v1649 = vrot.slane %v1640, %v1648
        %v1652 = vmul.f32 %v1645, %v1583
        %v1653 = vmul.f32 %v1649, %v1584
        %1655 = vset.pattern.permute.xlu0 0
        %1656 = vperm.xlu0 %1655, %v1638
        %v1657 = vpop.permute.xlu0 %1656
        %v1659 = vmul.f32 %v1657, %v1652
        %v1660 = vmul.f32 %v1657, %v1653
        %v1661 = vadd.f32 %v1635, %v1659
        %v1662 = vadd.f32 %v1636, %v1660
        %s1663 = scalar_lea.vmem %s3, 66
        %v1664 = vld [vmem:[%s1663] sm:$0x3]
        %s1665 = scalar_lea.vmem %s2, 66
        %v1666 = vld [vmem:[%s1665] sm:$0x3]
        %v1668 = vlaneseq
        %v1669 = vshrl.u32 %v1668, 7
        %v1670 = vsub.s32 0, %v1669
        %v1671 = vrot.slane %v1666, %v1670
        %v1672 = vlaneseq
        %v1673 = vshrl.u32 %v1672, 7
        %v1674 = vsub.s32 1, %v1673
        %v1675 = vrot.slane %v1666, %v1674
        %v1678 = vmul.f32 %v1671, %v1524
        %v1679 = vmul.f32 %v1675, %v1525
        %1681 = vset.pattern.permute.xlu0 0
        %1682 = vperm.xlu0 %1681, %v1664
        %v1683 = vpop.permute.xlu0 %1682
        %v1685 = vmul.f32 %v1683, %v1678
        %v1686 = vmul.f32 %v1683, %v1679
        %v1687 = vadd.f32 %v1661, %v1685
        %v1688 = vadd.f32 %v1662, %v1686
        %s1689 = scalar_lea.vmem %s3, 68
        %v1690 = vld [vmem:[%s1689] sm:$0x3]
        %s1691 = scalar_lea.vmem %s2, 68
        %v1692 = vld [vmem:[%s1691] sm:$0x3]
        %v1694 = vlaneseq
        %v1695 = vshrl.u32 %v1694, 7
        %v1696 = vsub.s32 0, %v1695
        %v1697 = vrot.slane %v1692, %v1696
        %v1698 = vlaneseq
        %v1699 = vshrl.u32 %v1698, 7
        %v1700 = vsub.s32 1, %v1699
        %v1701 = vrot.slane %v1692, %v1700
        %v1704 = vmul.f32 %v1697, %v1514
        %v1705 = vmul.f32 %v1701, %v1513
        %1707 = vset.pattern.permute.xlu0 0
        %1708 = vperm.xlu0 %1707, %v1690
        %v1709 = vpop.permute.xlu0 %1708
        %v1711 = vmul.f32 %v1709, %v1704
        %v1712 = vmul.f32 %v1709, %v1705
        %v1713 = vadd.f32 %v1687, %v1711
        %v1714 = vadd.f32 %v1688, %v1712
        %s1715 = scalar_lea.vmem %s3, 70
        %v1716 = vld [vmem:[%s1715] sm:$0x3]
        %s1717 = scalar_lea.vmem %s2, 70
        %v1718 = vld [vmem:[%s1717] sm:$0x3]
        %v1720 = vlaneseq
        %v1721 = vshrl.u32 %v1720, 7
        %v1722 = vsub.s32 0, %v1721
        %v1723 = vrot.slane %v1718, %v1722
        %v1724 = vlaneseq
        %v1725 = vshrl.u32 %v1724, 7
        %v1726 = vsub.s32 1, %v1725
        %v1727 = vrot.slane %v1718, %v1726
        %v1730 = vmul.f32 %v1723, %v1584
        %v1731 = vmul.f32 %v1727, %v1583
        %1733 = vset.pattern.permute.xlu0 0
        %1734 = vperm.xlu0 %1733, %v1716
        %v1735 = vpop.permute.xlu0 %1734
        %v1737 = vmul.f32 %v1735, %v1730
        %v1738 = vmul.f32 %v1735, %v1731
        %v1739 = vadd.f32 %v1713, %v1737
        %v1740 = vadd.f32 %v1714, %v1738
        %v1743 = vrot.slane %v930, 6
        %v1744 = vrot.slane %v931, 6
        %v1749 = vrot.slane %v1320, 4
        %v1750 = vrot.slane %v1321, 4
        %v1755 = vrot.slane %v1739, 2
        %v1756 = vrot.slane %v1740, 2
        %vm1759 = vcmask 1041408
        %v1760 = vsel %vm1759, %v573, %v1743
        %v1761 = vsel %vm1759, %v574, %v1744
        %vm1762 = vcmask 1043456
        %v1763 = vsel %vm1762, %v1760, %v1749
        %v1764 = vsel %vm1762, %v1761, %v1750
        %vm1765 = vcmask 1045504
        %v1766 = vsel %vm1765, %v1763, %v1755
        %v1767 = vsel %vm1765, %v1764, %v1756
        %1769 = vset.pattern.permute.xlu0 0
        %1770 = vperm.xlu0 %1769, %v282
        %v1771 = vpop.permute.xlu0 %1770
        %vm1773 = vcmask 64512
        %v1775 = vsel %vm1773, %v281, 0
        %1777 = vmatprep.subr.mxu0 0.0
        %1778 = vmatpush1.msra.mxu0 0.0
        %1779 = vmatprep.subr.mxu0 0.0
        %1780 = vmatpush1.msra.mxu0 0.0
        %1781 = vmatprep.subr.mxu0 0.0
        %1782 = vmatpush1.msra.mxu0 0.0
        %1783 = vmatprep.subr.mxu0 0.0
        %1784 = vmatpush1.msra.mxu0 0.0
        %1785 = vmatprep.subr.mxu0 0.0
        %1786 = vmatpush1.msra.mxu0 0.0
        %1787 = vmatprep.subr.mxu0 0.0
        %1788 = vmatpush1.msra.mxu0 0.0
        %1789 = vmatprep.subr.mxu0 0.0
        %1790 = vmatpush1.msra.mxu0 0.0
        %1791 = vmatprep.subr.mxu0 0.0
        %1792 = vmatpush1.msra.mxu0 0.0
        %1793 = vmatprep.subr.mxu0 0.0
        %1794 = vmatpush1.msra.mxu0 0.0
        %1795 = vmatprep.subr.mxu0 0.0
        %1796 = vmatpush1.msra.mxu0 0.0
        %1797 = vmatprep.subr.mxu0 0.0
        %1798 = vmatpush1.msra.mxu0 0.0
        %1799 = vmatprep.subr.mxu0 0.0
        %1800 = vmatpush1.msra.mxu0 0.0
        %1801 = vmatprep.subr.mxu0 0.0
        %1802 = vmatpush1.msra.mxu0 0.0
        %1803 = vmatprep.subr.mxu0 0.0
        %1804 = vmatpush1.msra.mxu0 0.0
        %1805 = vmatprep.subr.mxu0 0.0
        %1806 = vmatpush1.msra.mxu0 0.0
        %1807 = vmatprep.subr.mxu0 %v1767
        %1808 = vmatpush1.msra.mxu0 %v1766
        %1809 = vmatprep.subr.mxu0 0.0
        %1810 = vmatpush2.msra.mxu0 0.0
        %1811 = vmatprep.subr.mxu0 0.0
        %1812 = vmatpush2.msra.mxu0 0.0
        %1813 = vmatprep.subr.mxu0 0.0
        %1814 = vmatpush2.msra.mxu0 0.0
        %1815 = vmatprep.subr.mxu0 0.0
        %1816 = vmatpush2.msra.mxu0 0.0
        %1817 = vmatprep.subr.mxu0 0.0
        %1818 = vmatpush2.msra.mxu0 0.0
        %1819 = vmatprep.subr.mxu0 0.0
        %1820 = vmatpush2.msra.mxu0 0.0
        %1821 = vmatprep.subr.mxu0 0.0
        %1822 = vmatpush2.msra.mxu0 0.0
        %1823 = vmatprep.subr.mxu0 0.0
        %1824 = vmatpush2.msra.mxu0 0.0
        %1825 = vmatprep.subr.mxu0 0.0
        %1826 = vmatpush2.msra.mxu0 0.0
        %1827 = vmatprep.subr.mxu0 0.0
        %1828 = vmatpush2.msra.mxu0 0.0
        %1829 = vmatprep.subr.mxu0 0.0
        %1830 = vmatpush2.msra.mxu0 0.0
        %1831 = vmatprep.subr.mxu0 0.0
        %1832 = vmatpush2.msra.mxu0 0.0
        %1833 = vmatprep.subr.mxu0 0.0
        %1834 = vmatpush2.msra.mxu0 0.0
        %1835 = vmatprep.subr.mxu0 0.0
        %1836 = vmatpush2.msra.mxu0 0.0
        %1837 = vmatprep.subr.mxu0 0.0
        %1838 = vmatpush2.msra.mxu0 0.0
        %1839 = vmatprep.subr.mxu0 0.0
        %1840 = vmatpush2.msra.mxu0 0.0
        %1841 = vmatprep.mubr.f32.mxu0 0.0
        %1842 = vmatmul.mubr.f32.gmra.mxu0 %v1775
        %v1843 = vpop.f32.mrf.mxu0
        %v1844 = vadd.f32 %v1771, %v1843
        %v1845 = vpop.f32.mrf.mxu0
        %v1846 = vadd.f32 %v1771, %v1845
        %1847 = vdwg.mxu0
        %v1848 = vmul.f32 %v1844, 0.5
        %v1849 = vmul.f32 %v1846, 0.5
        %v1850 = vmul.f32 %v1844, 0.70710677
        %v1851 = vmul.f32 %v1846, 0.70710677
        %vm1852 = vcmp.ge.f32.partialorder %v1850, 0.0
        %vm1853 = vcmp.ge.f32.partialorder %v1851, 0.0
        %v1854 = vsel %vm1852, 1.0, -1.0
        %v1855 = vsel %vm1853, 1.0, -1.0
        %v1856 = vand.u32 2147483647, %v1850
        %v1857 = vand.u32 2147483647, %v1851
        %v1858 = vmul.f32 %v1856, 0.3275911
        %v1859 = vmul.f32 %v1857, 0.3275911
        %v1860 = vadd.f32 %v1858, 1.0
        %v1861 = vadd.f32 %v1859, 1.0
        %v1862 = vrcp.pop %v1860
        %v1863 = vmul.f32 1.0, %v1862
        %v1864 = vrcp.pop %v1861
        %v1865 = vmul.f32 1.0, %v1864
        %v1866 = vmul.f32 %v1863, 1.0614054
        %v1867 = vmul.f32 %v1865, 1.0614054
        %v1868 = vadd.f32 %v1866, -1.4531521
        %v1869 = vadd.f32 %v1867, -1.4531521
        %v1870 = vmul.f32 %v1868, %v1863
        %v1871 = vmul.f32 %v1869, %v1865
        %v1872 = vadd.f32 %v1870, 1.4214138
        %v1873 = vadd.f32 %v1871, 1.4214138
        %v1874 = vmul.f32 %v1872, %v1863
        %v1875 = vmul.f32 %v1873, %v1865
        %v1876 = vadd.f32 %v1874, -0.28449672
        %v1877 = vadd.f32 %v1875, -0.28449672
        %v1878 = vmul.f32 %v1876, %v1863
        %v1879 = vmul.f32 %v1877, %v1865
        %v1880 = vadd.f32 %v1878, 0.2548296
        %v1881 = vadd.f32 %v1879, 0.2548296
        %v1882 = vmul.f32 %v1880, %v1863
        %v1883 = vmul.f32 %v1881, %v1865
        %v1884 = vsub.f32 0.0, %v1856
        %v1885 = vsub.f32 0.0, %v1857
        %v1886 = vmul.f32 %v1884, %v1856
        %v1887 = vmul.f32 %v1885, %v1857
        %v1888 = vmul.f32 %v1886, 1.442695
        %v1889 = vpow.pop %v1888
        %v1890 = vmul.f32 %v1887, 1.442695
        %v1891 = vpow.pop %v1890
        %v1892 = vmul.f32 %v1882, %v1889
        %v1893 = vmul.f32 %v1883, %v1891
        %v1894 = vsub.f32 1.0, %v1892
        %v1895 = vsub.f32 1.0, %v1893
        %v1896 = vmul.f32 %v1854, %v1894
        %v1897 = vmul.f32 %v1855, %v1895
        %v1898 = vadd.f32 %v1896, 1.0
        %v1899 = vadd.f32 %v1897, 1.0
        %v1900 = vmul.f32 %v1848, %v1898
        %v1901 = vmul.f32 %v1849, %v1899
        %v1902 = vmul.f32 %v1900, %v300
        %v1903 = vmul.f32 %v1901, %v301
        %1904 = vst [vmem:[%s280] sm:$0xff] %v1902
        %1905 = vst [vmem:[%s280 + $0x8] sm:$0xff] %v1903
        %s1906 = sand.u32 %s163, 1
        %s1907 = scalar_lea.sflag [#allocation4], %s1906
        %s1908 = sand.u32 %s163, 1
        %s1909 = smul.addr %s1908, 16
        %s1910 = scalar_lea.vmem [#allocation7], %s1909
        // Predicated region
        $region53: #{tpu_custom_call.1} parent=43 // pred_check
          %p1911 = pneg %p173
        $region54: #{tpu_custom_call.1} parent=43 // pred_check_branch
          %1913 = sbr.rel (%p1911) target = $region56
        $region55: #{tpu_custom_call.1} parent=43 // pred_region
          %s1915 = ssub.s32 256, 256
          %1916 = vsyncadd %s1907, %s1915
          %s1917 = smul.addr %s24, 2
          %s1918 = smul.addr %s1917, 128
          %s1919 = scalar_lea.hbm %s6, %s1918
          %s1921 = sshll.u32 %s1910, 4
          %s1922 = int_to_ptr.vmem [resolvable:$true] %s1921
          %1924 = dma.vmem_to_hbm [thread:$0]  %s1922, 256, %s1919, %s1907
        $region56: #{tpu_custom_call.1} parent=43 // pred_fallthru
          _
      $region44: #{tpu_custom_call.1} parent=5 // pred_fallthru
        _
      %p1925 = scmp.le.s32.totalorder 2, %s19
      // Predicated region
      $region57: #{tpu_custom_call.1} parent=5 // pred_check
        %p1926 = pneg %p1925
      $region58: #{tpu_custom_call.1} parent=5 // pred_check_branch
        %1928 = sbr.rel (%p1926) target = $region60
      $region59: #{tpu_custom_call.1} parent=5 // pred_region
        %s1929 = ssub.s32 %s19, 2
        // Predicated region
        $region61: #{tpu_custom_call.1} parent=59 // pred_check
          %p1930 = pneg %p179
        $region62: #{tpu_custom_call.1} parent=59 // pred_check_branch
          %1932 = sbr.rel (%p1930) target = $region64
        $region63: #{tpu_custom_call.1} parent=59 // pred_region
          %s1933 = sand.u32 %s164, 1
          %s1934 = scalar_lea.sflag [#allocation4], %s1933
          %s1935 = sand.u32 %s164, 1
          %s1936 = smul.addr %s1935, 16
          %s1937 = scalar_lea.vmem [#allocation7], %s1936
          %1938 = dma.done %s1934, 256
        $region64: #{tpu_custom_call.1} parent=59 // pred_fallthru
          _
      $region60: #{tpu_custom_call.1} parent=5 // pred_fallthru
        _
    $region6: #{tpu_custom_call.1} parent=1 // loop_footer
      %s23 = sadd.s32 1, %s19
    $region7: #{tpu_custom_call.1} parent=1 // loop_footer_branch
      %18 = sbr.rel target = $region3
    $region8: #{tpu_custom_call.1} parent=1 // loop_exit
      _
    %1939 = vsyncpa [#allocation3], 1
    %s1940 = scalar_lea.sflag [#allocation3], 1
    %1941 = vsyncpa %s1940, 1
    %1942 = vsyncpa [#allocation6], 1
    %1943 = vsyncpa [#allocation4], 1
    %s1944 = scalar_lea.sflag [#allocation4], 1
    %1945 = vsyncpa %s1944, 1

</llo_original>
